<compile_context>
chip_gen: v5e
topology: v5e:2x2
jax: 0.10.0
libtpu: 0.0.40
codegen_flags: <defaults>
</compile_context>

<pallas_src>
import jax
import jax.numpy as jnp
import numpy as np
from jax.experimental import pallas as pl

# ----------------------------- model dimensions (small, synthetic) -----------------------------
B   = 2     # batch
K   = 8     # num_objs
DV  = 32    # obj_dim
SQ  = 8     # question seq length
SA  = 4     # answer seq length
E   = 32    # word embedding dim
H   = 32    # GRU hidden dim
A   = 32    # attention hidden dim
NA  = 16    # number of answer classes
VQ  = 50    # question vocab
VA  = 40    # answer vocab

PB  = 8                         # batch padded to one sublane tile
G2  = 2 * H                     # 64  : joint (q | a) width per gate / per feature
G6  = 3 * G2                    # 192 : three gates, joint
NV  = VQ + VA                   # 90  : combined one-hot vocab
NVP = ((NV + 7) // 8) * 8       # 96  : sublane-padded fused-embedding table rows


# =================================== fused Pallas kernel ===================================

def fused_forward_kernel(idx_ref, v_ref, wgru_ref, wsc_ref, out_ref):
    Bb = out_ref.shape[0]
    Kk = v_ref.shape[0] // Bb

    # ---------------- carve the two packed weight buffers (static slices = free views) --------
    emb_wx = wgru_ref[0:NVP, :]                                    # [96,192] emb@Wx, biases folded
    wh_bf  = wgru_ref[NVP:NVP + G2, :].astype(jnp.bfloat16)        # [64,192] block-diag(q,a) x 3 gates

    wq_bd  = wsc_ref[0:G2, :].astype(jnp.bfloat16)                 # [64,64] block-diag SAN wq
    wv_bth = wsc_ref[G2:G2 + DV, :].astype(jnp.bfloat16)           # [32,64] [wv0 | wv1]
    wproj0 = wsc_ref[96:128, 0:H].astype(jnp.bfloat16)             # [32,32]
    wproj1 = wsc_ref[128:160, 0:H].astype(jnp.bfloat16)            # [32,32]
    w1     = wsc_ref[160:192, :].astype(jnp.bfloat16)              # [32,64]
    w2     = wsc_ref[192:256, 0:NA].astype(jnp.bfloat16)           # [64,16]
    bias   = wsc_ref[256:264, :]                                   # [8,64] bias block
    bq, bh_n, b1 = bias[0:1, :], bias[1:2, :], bias[2:3, :]
    b2 = bias[3:4, 0:NA]
    wp = bias[4:5, :]                                              # [1,64] [wp0 | wp1]

    # ------- embedding lookup + ALL GRU input projections (+bx/bh_r,z folded): ONE matmul ------
    idx = idx_ref[...]                                             # [SQ*8, 2] int32, -1 = inactive slot
    vio = jax.lax.broadcasted_iota(jnp.int32, (SQ * PB, NVP), 1)
    onehot = jnp.logical_or(vio == idx[:, 0:1],
                            vio == idx[:, 1:2]).astype(jnp.float32)          # [64, 96]
    gi = jnp.dot(onehot, emb_wx, preferred_element_type=jnp.float32)         # [64, 192]
    gi_r, gi_z, gi_n = gi[:, 0:G2], gi[:, G2:2 * G2], gi[:, 2 * G2:3 * G2]   # hoisted gate split

    # ---------------- joint (q | a) GRU recurrence: one bf16 matmul per step -------------------
    bh_nb = jnp.broadcast_to(bh_n, (PB, G2))                        # hoisted out of the loop
    qlane = jax.lax.broadcasted_iota(jnp.int32, (PB, G2), 1) < H    # lanes 0:H = q branch
    h = jnp.zeros((PB, G2), jnp.float32)
    for t in range(SQ):                                             # short fixed trip -> static unroll
        lo = t * PB                                                 # 8-row aligned slices (free views)
        gh = jnp.dot(h.astype(jnp.bfloat16), wh_bf,
                     preferred_element_type=jnp.float32)            # [8,192]
        r = jax.nn.sigmoid(gi_r[lo:lo + PB, :] + gh[:, 0:G2])
        z = jax.nn.sigmoid(gi_z[lo:lo + PB, :] + gh[:, G2:2 * G2])
        n = jnp.tanh(gi_n[lo:lo + PB, :] + r * (gh[:, 2 * G2:3 * G2] + bh_nb))
        h_new = (1.0 - z) * n + z * h
        # a-branch runs only SA steps: freeze its lanes afterwards (exact GRU semantics).
        h = h_new if t < SA else jnp.where(qlane, h_new, h)
    # h[:, 0:H] = q_emb, h[:, H:2H] = a_emb (padded rows b>=B hold garbage, discarded later)

    # ---------------- fused two-branch SAN over the single resident copy of v ------------------
    v_f32 = v_ref[...]                                                            # [B*K, Dv]
    qe = jnp.dot(h.astype(jnp.bfloat16), wq_bd,
                 preferred_element_type=jnp.float32) + bq                         # [8,64]
    ve = jnp.dot(v_f32.astype(jnp.bfloat16), wv_bth,
                 preferred_element_type=jnp.float32)                              # [16,64]

    def _softmax(s):                                                              # over K objects
        e = jnp.exp(s - jnp.max(s, axis=0, keepdims=True))
        return e * pl.reciprocal(jnp.sum(e, axis=0, keepdims=True), approx=True)

    att0_rows, att1_rows = [], []
    for b in range(Bb):                            # tiny static unroll: softmax / weighted-sum only
        sl = slice(b * Kk, (b + 1) * Kk)           # K=8 -> sublane-aligned slice
        hb = jnp.tanh(ve[sl, :] + qe[b:b + 1, :])                                 # [K,64]
        sb = hb * wp
        # bp dropped on purpose: softmax is shift-invariant, result is mathematically identical.
        s0 = jnp.sum(sb[:, 0:H], axis=-1, keepdims=True)                          # [K,1] q branch
        s1 = jnp.sum(sb[:, H:G2], axis=-1, keepdims=True)                         # [K,1] a branch
        vb = v_f32[sl, :]
        att0_rows.append(jnp.sum(_softmax(s0) * vb, axis=0, keepdims=True))       # [1,Dv]
        att1_rows.append(jnp.sum(_softmax(s1) * vb, axis=0, keepdims=True))       # [1,Dv]
    att0 = jnp.concatenate(att0_rows, axis=0)                                     # [B,Dv]
    att1 = jnp.concatenate(att1_rows, axis=0)                                     # [B,Dv]

    # vq_logits + va_logits = (q_emb + a_emb) + att0 @ wproj0 + att1 @ wproj1
    x = (h[0:Bb, 0:H] + h[0:Bb, H:G2]
         + jnp.dot(att0.astype(jnp.bfloat16), wproj0, preferred_element_type=jnp.float32)
         + jnp.dot(att1.astype(jnp.bfloat16), wproj1, preferred_element_type=jnp.float32))

    # ---------------- classifier: Linear -> ReLU -> Linear ----------------
    h1 = jnp.maximum(jnp.dot(x.astype(jnp.bfloat16), w1,
                             preferred_element_type=jnp.float32) + b1, 0.0)
    out_ref[...] = jnp.dot(h1.astype(jnp.bfloat16), w2,
                           preferred_element_type=jnp.float32) + b2


# =================================== host-side weight packing ===================================

def pack_params(params):
    """Pre-pack all weights into two flat f32 buffers (done ONCE, outside the jit path)."""
    gq, ga, att = params["gru_q"], params["gru_a"], params["att"]
    zH = jnp.zeros((H, H), jnp.float32)

    # ---- buffer A [160, 192]: fused embedding/input-projection table + block-diag Wh ----
    def branch_cols(emb, wx, bx, bh):
        # per-gate fused (emb @ Wx), with biases folded: (bx+bh) for r,z; bx only for n
        return (emb @ wx[0] + (bx[0] + bh[0]),
                emb @ wx[1] + (bx[1] + bh[1]),
                emb @ wx[2] + bx[2])

    qr, qz, qn = branch_cols(params["emb_q"], gq["wx"], gq["bx"], gq["bh"])   # [VQ,H] each
    ar, az, an = branch_cols(params["emb_a"], ga["wx"], ga["bx"], ga["bh"])   # [VA,H] each
    zq, za = jnp.zeros((VQ, H), jnp.float32), jnp.zeros((VA, H), jnp.float32)
    t_q = jnp.concatenate([qr, zq, qz, zq, qn, zq], axis=1)                   # [VQ,192]
    t_a = jnp.concatenate([za, ar, za, az, za, an], axis=1)                   # [VA,192]
    t_joint = jnp.concatenate(
        [t_q, t_a, jnp.zeros((NVP - NV, G6), jnp.float32)], axis=0)           # [96,192]

    wh_cols = []
    for g in range(3):
        wh_cols.append(jnp.concatenate([gq["wh"][g], zH], axis=0))            # q lanes of gate g
        wh_cols.append(jnp.concatenate([zH, ga["wh"][g]], axis=0))            # a lanes of gate g
    wh_joint = jnp.concatenate(wh_cols, axis=1)                               # [64,192]
    wgru = jnp.concatenate([t_joint, wh_joint], axis=0)                       # [160,192]

    # ---- buffer B [264, 64]: SAN + classifier weights + bias block ----
    zA = jnp.zeros((H, A), jnp.float32)
    wq_bd = jnp.concatenate([jnp.concatenate([att["wq"][0], zA], axis=1),
                             jnp.concatenate([zA, att["wq"][1]], axis=1)], axis=0)   # [64,64]
    wv_both = jnp.concatenate([att["wv"][0], att["wv"][1]], axis=1)                  # [32,64]
    zpad = jnp.zeros((DV, G2 - H), jnp.float32)
    wproj0 = jnp.concatenate([att["wproj"][0], zpad], axis=1)                        # [32,64]
    wproj1 = jnp.concatenate([att["wproj"][1], zpad], axis=1)                        # [32,64]
    w2_pad = jnp.concatenate([params["w2"],
                              jnp.zeros((2 * H, G2 - NA), jnp.float32)], axis=1)     # [64,64]

    bias = jnp.zeros((8, G2), jnp.float32)
    bias = bias.at[0, :].set(jnp.concatenate([att["bq"][0], att["bq"][1]], axis=1)[0])
    bias = bias.at[1, :].set(jnp.concatenate([gq["bh"][2], ga["bh"][2]], axis=1)[0])
    bias = bias.at[2, :].set(params["b1"][0])
    bias = bias.at[3, 0:NA].set(params["b2"][0])
    bias = bias.at[4, :].set(jnp.concatenate([att["wp"][0], att["wp"][1]], axis=1)[0])

    wsc = jnp.concatenate([wq_bd, wv_both, wproj0, wproj1,
                           params["w1"], w2_pad, bias], axis=0)                       # [264,64]
    return {"wgru": wgru, "wsc": wsc}


# =================================== wrapper ===================================

@jax.jit
def stacked_attention_model_forward(packed, v, q, a):
    """v: [B,K,Dv] f32, q: [B,Sq] int32, a: [B,Sa] int32 -> logits [B,NA]."""
    Bb, Kk, Dv = v.shape
    assert Bb <= PB
    # Time-major, 8-sublane padded index pairs (q index, VQ + a index); -1 marks inactive slots
    # (padded batch rows or a-branch timesteps past SA).  Only tiny int arrays are shuffled here.
    qpad = jnp.full((SQ, PB), -1, jnp.int32).at[:, :Bb].set(q.T)
    apad = jnp.full((SQ, PB), -1, jnp.int32).at[:SA, :Bb].set(a.T + VQ)
    idx2 = jnp.stack([qpad.reshape(-1), apad.reshape(-1)], axis=1)            # [SQ*8, 2]
    v_flat = v.reshape(Bb * Kk, Dv)                                           # contiguous -> free

    # TODO(synk): on v7x the independent q/a branches could be split over the 2 TensorCores via
    # pl.core_map + pltpu.create_tensorcore_mesh; the block-diag fusion already captures most of
    # that win on one core, so the portable single-core path is kept.
    return pl.pallas_call(
        fused_forward_kernel,
        out_shape=jax.ShapeDtypeStruct((Bb, NA), jnp.float32),
    )(idx2, v_flat, packed["wgru"], packed["wsc"])


# =================================== pure-JAX reference ===================================

def gru_ref(x_bse, g):
    Bb = x_bse.shape[0]
    Hh = g["wh"].shape[-1]

    def step(h, x_t):
        r = jax.nn.sigmoid(x_t @ g["wx"][0] + g["bx"][0] + h @ g["wh"][0] + g["bh"][0])
        z = jax.nn.sigmoid(x_t @ g["wx"][1] + g["bx"][1] + h @ g["wh"][1] + g["bh"][1])
        n = jnp.tanh(x_t @ g["wx"][2] + g["bx"][2] + r * (h @ g["wh"][2] + g["bh"][2]))
        return (1.0 - z) * n + z * h, None

    h0 = jnp.zeros((Bb, Hh), jnp.float32)
    h_last, _ = jax.lax.scan(step, h0, jnp.transpose(x_bse, (1, 0, 2)))
    return h_last


def san_ref(v, q_emb, att, idx):
    qe = q_emb @ att["wq"][idx] + att["bq"][idx]
    ve = jnp.einsum("bkd,da->bka", v, att["wv"][idx])
    hcomb = jnp.tanh(ve + qe[:, None, :])
    s = jnp.sum(hcomb * att["wp"][idx][None, :, :], axis=-1, keepdims=True) + att["bp"][idx]
    w = jax.nn.softmax(s, axis=1)
    att_v = jnp.sum(w * v, axis=1)
    return q_emb + att_v @ att["wproj"][idx]


def model_ref(params, v, q, a):
    w_emb = jnp.take(params["emb_q"], q, axis=0)
    wa_emb = jnp.take(params["emb_a"], a, axis=0)
    q_emb = gru_ref(w_emb, params["gru_q"])
    a_emb = gru_ref(wa_emb, params["gru_a"])
    x = san_ref(v, q_emb, params["att"], 0) + san_ref(v, a_emb, params["att"], 1)
    h = jnp.maximum(x @ params["w1"] + params["b1"], 0.0)
    return h @ params["w2"] + params["b2"]


# =================================== params / main ===================================

def init_params(key):
    ks = iter(jax.random.split(key, 24))

    def nrm(shape, scale=0.1):
        return jax.random.normal(next(ks), shape, jnp.float32) * scale

    def gru_params():
        # gate order (r, z, n); gate-stacked for host-side packing
        return {"wx": nrm((3, E, H)), "wh": nrm((3, H, H)),
                "bx": nrm((3, 1, H)), "bh": nrm((3, 1, H))}

    att = {  # index 0 = v_att (question branch), index 1 = va_att (answer branch)
        "wq": nrm((2, H, A)), "bq": nrm((2, 1, A)),
        "wv": nrm((2, DV, A)),
        "wp": nrm((2, 1, A)), "bp": nrm((2, 1, 1)),
        "wproj": nrm((2, DV, H)),
    }
    return {
        "emb_q": nrm((VQ, E)),
        "emb_a": nrm((VA, E)),
        "gru_q": gru_params(),
        "gru_a": gru_params(),
        "att": att,
        "w1": nrm((H, 2 * H)), "b1": nrm((1, 2 * H)),
        "w2": nrm((2 * H, NA)), "b2": nrm((1, NA)),
    }


if __name__ == "__main__":
    root = jax.random.PRNGKey(0)
    k_p, k_v, k_q, k_a = jax.random.split(root, 4)

    params = init_params(k_p)
    packed = pack_params(params)                     # one-time host-side packing (2 flat buffers)

    v = jax.random.normal(k_v, (B, K, DV), jnp.float32)
    q = jax.random.randint(k_q, (B, SQ), 0, VQ, jnp.int32)
    a = jax.random.randint(k_a, (B, SA), 0, VA, jnp.int32)

    logits = jax.block_until_ready(stacked_attention_model_forward(packed, v, q, a))
    ref = jax.block_until_ready(model_ref(params, v, q, a))

    assert logits.shape == (B, NA), logits.shape
    assert bool(jnp.all(jnp.isfinite(logits)))
    np.testing.assert_allclose(np.asarray(logits), np.asarray(ref), rtol=1e-2, atol=1e-2)

    # TODO(synk): dropout layers inside the original sub-modules are omitted (eval-mode semantics).
    print("KERNEL_OK")
</pallas_src>

<mosaic_0001>
module attributes {stable_mosaic.version = 11 : i64} {
  func.func @fused_forward_kernel(%arg0: memref<64x2xi32, #tpu.memory_space<vmem>>, %arg1: memref<16x32xf32, #tpu.memory_space<vmem>>, %arg2: memref<160x192xf32, #tpu.memory_space<vmem>>, %arg3: memref<264x64xf32, #tpu.memory_space<vmem>>, %arg4: memref<2x16xf32, #tpu.memory_space<vmem>>) attributes {dimension_semantics = [], scalar_prefetch = 0 : i64, scratch_operands = 0 : i64, tpu.core_type = #tpu.core_type<tc>} {
    %c0 = arith.constant 0 : index
    %c0_0 = arith.constant 0 : index
    %0 = vector.load %arg2[%c0, %c0_0] : memref<160x192xf32, #tpu.memory_space<vmem>>, vector<96x192xf32>
    %c96 = arith.constant 96 : index
    %c0_1 = arith.constant 0 : index
    %1 = vector.load %arg2[%c96, %c0_1] : memref<160x192xf32, #tpu.memory_space<vmem>>, vector<64x192xf32>
    %2 = arith.truncf %1 : vector<64x192xf32> to vector<64x192xbf16>
    %c0_2 = arith.constant 0 : index
    %c0_3 = arith.constant 0 : index
    %3 = vector.load %arg3[%c0_2, %c0_3] : memref<264x64xf32, #tpu.memory_space<vmem>>, vector<64x64xf32>
    %4 = arith.truncf %3 : vector<64x64xf32> to vector<64x64xbf16>
    %c64 = arith.constant 64 : index
    %c0_4 = arith.constant 0 : index
    %5 = vector.load %arg3[%c64, %c0_4] : memref<264x64xf32, #tpu.memory_space<vmem>>, vector<32x64xf32>
    %6 = arith.truncf %5 : vector<32x64xf32> to vector<32x64xbf16>
    %c96_5 = arith.constant 96 : index
    %c0_6 = arith.constant 0 : index
    %7 = vector.load %arg3[%c96_5, %c0_6] : memref<264x64xf32, #tpu.memory_space<vmem>>, vector<32x32xf32>
    %8 = arith.truncf %7 : vector<32x32xf32> to vector<32x32xbf16>
    %c128 = arith.constant 128 : index
    %c0_7 = arith.constant 0 : index
    %9 = vector.load %arg3[%c128, %c0_7] : memref<264x64xf32, #tpu.memory_space<vmem>>, vector<32x32xf32>
    %10 = arith.truncf %9 : vector<32x32xf32> to vector<32x32xbf16>
    %c160 = arith.constant 160 : index
    %c0_8 = arith.constant 0 : index
    %11 = vector.load %arg3[%c160, %c0_8] : memref<264x64xf32, #tpu.memory_space<vmem>>, vector<32x64xf32>
    %12 = arith.truncf %11 : vector<32x64xf32> to vector<32x64xbf16>
    %c192 = arith.constant 192 : index
    %c0_9 = arith.constant 0 : index
    %13 = vector.load %arg3[%c192, %c0_9] : memref<264x64xf32, #tpu.memory_space<vmem>>, vector<64x16xf32>
    %14 = arith.truncf %13 : vector<64x16xf32> to vector<64x16xbf16>
    %c256 = arith.constant 256 : index
    %c0_10 = arith.constant 0 : index
    %15 = vector.load %arg3[%c256, %c0_10] : memref<264x64xf32, #tpu.memory_space<vmem>>, vector<8x64xf32>
    %16 = vector.extract_strided_slice %15 {offsets = [0, 0], sizes = [1, 64], strides = [1, 1]} : vector<8x64xf32> to vector<1x64xf32>
    %17 = vector.extract_strided_slice %15 {offsets = [1, 0], sizes = [1, 64], strides = [1, 1]} : vector<8x64xf32> to vector<1x64xf32>
    %18 = vector.extract_strided_slice %15 {offsets = [2, 0], sizes = [1, 64], strides = [1, 1]} : vector<8x64xf32> to vector<1x64xf32>
    %19 = vector.extract_strided_slice %15 {offsets = [3, 0], sizes = [1, 16], strides = [1, 1]} : vector<8x64xf32> to vector<1x16xf32>
    %20 = vector.extract_strided_slice %15 {offsets = [4, 0], sizes = [1, 64], strides = [1, 1]} : vector<8x64xf32> to vector<1x64xf32>
    %c0_11 = arith.constant 0 : index
    %c0_12 = arith.constant 0 : index
    %21 = vector.load %arg0[%c0_11, %c0_12] : memref<64x2xi32, #tpu.memory_space<vmem>>, vector<64x2xi32>
    %22 = tpu.iota {dimensions = array<i32: 1>} : vector<64x96xi32>
    %23 = vector.extract_strided_slice %21 {offsets = [0, 0], sizes = [64, 1], strides = [1, 1]} : vector<64x2xi32> to vector<64x1xi32>
    %24 = vector.broadcast %23 : vector<64x1xi32> to vector<64x96xi32>
    %25 = arith.cmpi eq, %22, %24 : vector<64x96xi32>
    %26 = vector.extract_strided_slice %21 {offsets = [0, 1], sizes = [64, 1], strides = [1, 1]} : vector<64x2xi32> to vector<64x1xi32>
    %27 = vector.broadcast %26 : vector<64x1xi32> to vector<64x96xi32>
    %28 = arith.cmpi eq, %22, %27 : vector<64x96xi32>
    %29 = arith.ori %25, %28 : vector<64x96xi1>
    %30 = arith.extui %29 : vector<64x96xi1> to vector<64x96xi32>
    %31 = arith.sitofp %30 : vector<64x96xi32> to vector<64x96xf32>
    %cst = arith.constant dense<0.000000e+00> : vector<64x192xf32>
    %32 = tpu.matmul %31, %0, %cst {dimension_numbers = #tpu.dot_dimension_numbers<[1], [0], [0], [1], [0, 0, 1, 1], [], []>} : vector<64x96xf32>, vector<96x192xf32>, vector<64x192xf32> -> vector<64x192xf32>
    %33 = vector.extract_strided_slice %32 {offsets = [0, 0], sizes = [64, 64], strides = [1, 1]} : vector<64x192xf32> to vector<64x64xf32>
    %34 = vector.extract_strided_slice %32 {offsets = [0, 64], sizes = [64, 64], strides = [1, 1]} : vector<64x192xf32> to vector<64x64xf32>
    %35 = vector.extract_strided_slice %32 {offsets = [0, 128], sizes = [64, 64], strides = [1, 1]} : vector<64x192xf32> to vector<64x64xf32>
    %36 = vector.shape_cast %17 : vector<1x64xf32> to vector<1x64xf32>
    %37 = vector.broadcast %36 : vector<1x64xf32> to vector<8x64xf32>
    %38 = tpu.iota {dimensions = array<i32: 1>} : vector<8x64xi32>
    %c32_i32 = arith.constant 32 : i32
    %39 = vector.broadcast %c32_i32 : i32 to vector<8x64xi32>
    %40 = arith.cmpi slt, %38, %39 : vector<8x64xi32>
    %cst_13 = arith.constant 0.000000e+00 : f32
    %41 = vector.broadcast %cst_13 : f32 to vector<8x64xf32>
    %42 = arith.truncf %41 : vector<8x64xf32> to vector<8x64xbf16>
    %cst_14 = arith.constant dense<0.000000e+00> : vector<8x192xf32>
    %43 = tpu.matmul %42, %2, %cst_14 {dimension_numbers = #tpu.dot_dimension_numbers<[1], [0], [0], [1], [0, 0, 1, 1], [], []>} : vector<8x64xbf16>, vector<64x192xbf16>, vector<8x192xf32> -> vector<8x192xf32>
    %44 = vector.extract_strided_slice %33 {offsets = [0, 0], sizes = [8, 64], strides = [1, 1]} : vector<64x64xf32> to vector<8x64xf32>
    %45 = vector.extract_strided_slice %43 {offsets = [0, 0], sizes = [8, 64], strides = [1, 1]} : vector<8x192xf32> to vector<8x64xf32>
    %46 = arith.addf %44, %45 : vector<8x64xf32>
    %47 = arith.negf %46 : vector<8x64xf32>
    %48 = math.exp %47 : vector<8x64xf32>
    %cst_15 = arith.constant 1.000000e+00 : f32
    %49 = vector.broadcast %cst_15 : f32 to vector<8x64xf32>
    %50 = arith.addf %49, %48 : vector<8x64xf32>
    %51 = arith.divf %49, %50 : vector<8x64xf32>
    %52 = vector.extract_strided_slice %34 {offsets = [0, 0], sizes = [8, 64], strides = [1, 1]} : vector<64x64xf32> to vector<8x64xf32>
    %53 = vector.extract_strided_slice %43 {offsets = [0, 64], sizes = [8, 64], strides = [1, 1]} : vector<8x192xf32> to vector<8x64xf32>
    %54 = arith.addf %52, %53 : vector<8x64xf32>
    %55 = arith.negf %54 : vector<8x64xf32>
    %56 = math.exp %55 : vector<8x64xf32>
    %cst_16 = arith.constant 1.000000e+00 : f32
    %57 = vector.broadcast %cst_16 : f32 to vector<8x64xf32>
    %58 = arith.addf %57, %56 : vector<8x64xf32>
    %59 = arith.divf %57, %58 : vector<8x64xf32>
    %60 = vector.extract_strided_slice %35 {offsets = [0, 0], sizes = [8, 64], strides = [1, 1]} : vector<64x64xf32> to vector<8x64xf32>
    %61 = vector.extract_strided_slice %43 {offsets = [0, 128], sizes = [8, 64], strides = [1, 1]} : vector<8x192xf32> to vector<8x64xf32>
    %62 = arith.addf %61, %37 : vector<8x64xf32>
    %63 = arith.mulf %51, %62 : vector<8x64xf32>
    %64 = arith.addf %60, %63 : vector<8x64xf32>
    %65 = math.tanh %64 : vector<8x64xf32>
    %cst_17 = arith.constant 1.000000e+00 : f32
    %66 = vector.broadcast %cst_17 : f32 to vector<8x64xf32>
    %67 = arith.subf %66, %59 : vector<8x64xf32>
    %68 = arith.mulf %67, %65 : vector<8x64xf32>
    %69 = arith.mulf %59, %41 : vector<8x64xf32>
    %70 = arith.addf %68, %69 : vector<8x64xf32>
    %71 = arith.truncf %70 : vector<8x64xf32> to vector<8x64xbf16>
    %cst_18 = arith.constant dense<0.000000e+00> : vector<8x192xf32>
    %72 = tpu.matmul %71, %2, %cst_18 {dimension_numbers = #tpu.dot_dimension_numbers<[1], [0], [0], [1], [0, 0, 1, 1], [], []>} : vector<8x64xbf16>, vector<64x192xbf16>, vector<8x192xf32> -> vector<8x192xf32>
    %73 = vector.extract_strided_slice %33 {offsets = [8, 0], sizes = [8, 64], strides = [1, 1]} : vector<64x64xf32> to vector<8x64xf32>
    %74 = vector.extract_strided_slice %72 {offsets = [0, 0], sizes = [8, 64], strides = [1, 1]} : vector<8x192xf32> to vector<8x64xf32>
    %75 = arith.addf %73, %74 : vector<8x64xf32>
    %76 = arith.negf %75 : vector<8x64xf32>
    %77 = math.exp %76 : vector<8x64xf32>
    %cst_19 = arith.constant 1.000000e+00 : f32
    %78 = vector.broadcast %cst_19 : f32 to vector<8x64xf32>
    %79 = arith.addf %78, %77 : vector<8x64xf32>
    %80 = arith.divf %78, %79 : vector<8x64xf32>
    %81 = vector.extract_strided_slice %34 {offsets = [8, 0], sizes = [8, 64], strides = [1, 1]} : vector<64x64xf32> to vector<8x64xf32>
    %82 = vector.extract_strided_slice %72 {offsets = [0, 64], sizes = [8, 64], strides = [1, 1]} : vector<8x192xf32> to vector<8x64xf32>
    %83 = arith.addf %81, %82 : vector<8x64xf32>
    %84 = arith.negf %83 : vector<8x64xf32>
    %85 = math.exp %84 : vector<8x64xf32>
    %cst_20 = arith.constant 1.000000e+00 : f32
    %86 = vector.broadcast %cst_20 : f32 to vector<8x64xf32>
    %87 = arith.addf %86, %85 : vector<8x64xf32>
    %88 = arith.divf %86, %87 : vector<8x64xf32>
    %89 = vector.extract_strided_slice %35 {offsets = [8, 0], sizes = [8, 64], strides = [1, 1]} : vector<64x64xf32> to vector<8x64xf32>
    %90 = vector.extract_strided_slice %72 {offsets = [0, 128], sizes = [8, 64], strides = [1, 1]} : vector<8x192xf32> to vector<8x64xf32>
    %91 = arith.addf %90, %37 : vector<8x64xf32>
    %92 = arith.mulf %80, %91 : vector<8x64xf32>
    %93 = arith.addf %89, %92 : vector<8x64xf32>
    %94 = math.tanh %93 : vector<8x64xf32>
    %cst_21 = arith.constant 1.000000e+00 : f32
    %95 = vector.broadcast %cst_21 : f32 to vector<8x64xf32>
    %96 = arith.subf %95, %88 : vector<8x64xf32>
    %97 = arith.mulf %96, %94 : vector<8x64xf32>
    %98 = arith.mulf %88, %70 : vector<8x64xf32>
    %99 = arith.addf %97, %98 : vector<8x64xf32>
    %100 = arith.truncf %99 : vector<8x64xf32> to vector<8x64xbf16>
    %cst_22 = arith.constant dense<0.000000e+00> : vector<8x192xf32>
    %101 = tpu.matmul %100, %2, %cst_22 {dimension_numbers = #tpu.dot_dimension_numbers<[1], [0], [0], [1], [0, 0, 1, 1], [], []>} : vector<8x64xbf16>, vector<64x192xbf16>, vector<8x192xf32> -> vector<8x192xf32>
    %102 = vector.extract_strided_slice %33 {offsets = [16, 0], sizes = [8, 64], strides = [1, 1]} : vector<64x64xf32> to vector<8x64xf32>
    %103 = vector.extract_strided_slice %101 {offsets = [0, 0], sizes = [8, 64], strides = [1, 1]} : vector<8x192xf32> to vector<8x64xf32>
    %104 = arith.addf %102, %103 : vector<8x64xf32>
    %105 = arith.negf %104 : vector<8x64xf32>
    %106 = math.exp %105 : vector<8x64xf32>
    %cst_23 = arith.constant 1.000000e+00 : f32
    %107 = vector.broadcast %cst_23 : f32 to vector<8x64xf32>
    %108 = arith.addf %107, %106 : vector<8x64xf32>
    %109 = arith.divf %107, %108 : vector<8x64xf32>
    %110 = vector.extract_strided_slice %34 {offsets = [16, 0], sizes = [8, 64], strides = [1, 1]} : vector<64x64xf32> to vector<8x64xf32>
    %111 = vector.extract_strided_slice %101 {offsets = [0, 64], sizes = [8, 64], strides = [1, 1]} : vector<8x192xf32> to vector<8x64xf32>
    %112 = arith.addf %110, %111 : vector<8x64xf32>
    %113 = arith.negf %112 : vector<8x64xf32>
    %114 = math.exp %113 : vector<8x64xf32>
    %cst_24 = arith.constant 1.000000e+00 : f32
    %115 = vector.broadcast %cst_24 : f32 to vector<8x64xf32>
    %116 = arith.addf %115, %114 : vector<8x64xf32>
    %117 = arith.divf %115, %116 : vector<8x64xf32>
    %118 = vector.extract_strided_slice %35 {offsets = [16, 0], sizes = [8, 64], strides = [1, 1]} : vector<64x64xf32> to vector<8x64xf32>
    %119 = vector.extract_strided_slice %101 {offsets = [0, 128], sizes = [8, 64], strides = [1, 1]} : vector<8x192xf32> to vector<8x64xf32>
    %120 = arith.addf %119, %37 : vector<8x64xf32>
    %121 = arith.mulf %109, %120 : vector<8x64xf32>
    %122 = arith.addf %118, %121 : vector<8x64xf32>
    %123 = math.tanh %122 : vector<8x64xf32>
    %cst_25 = arith.constant 1.000000e+00 : f32
    %124 = vector.broadcast %cst_25 : f32 to vector<8x64xf32>
    %125 = arith.subf %124, %117 : vector<8x64xf32>
    %126 = arith.mulf %125, %123 : vector<8x64xf32>
    %127 = arith.mulf %117, %99 : vector<8x64xf32>
    %128 = arith.addf %126, %127 : vector<8x64xf32>
    %129 = arith.truncf %128 : vector<8x64xf32> to vector<8x64xbf16>
    %cst_26 = arith.constant dense<0.000000e+00> : vector<8x192xf32>
    %130 = tpu.matmul %129, %2, %cst_26 {dimension_numbers = #tpu.dot_dimension_numbers<[1], [0], [0], [1], [0, 0, 1, 1], [], []>} : vector<8x64xbf16>, vector<64x192xbf16>, vector<8x192xf32> -> vector<8x192xf32>
    %131 = vector.extract_strided_slice %33 {offsets = [24, 0], sizes = [8, 64], strides = [1, 1]} : vector<64x64xf32> to vector<8x64xf32>
    %132 = vector.extract_strided_slice %130 {offsets = [0, 0], sizes = [8, 64], strides = [1, 1]} : vector<8x192xf32> to vector<8x64xf32>
    %133 = arith.addf %131, %132 : vector<8x64xf32>
    %134 = arith.negf %133 : vector<8x64xf32>
    %135 = math.exp %134 : vector<8x64xf32>
    %cst_27 = arith.constant 1.000000e+00 : f32
    %136 = vector.broadcast %cst_27 : f32 to vector<8x64xf32>
    %137 = arith.addf %136, %135 : vector<8x64xf32>
    %138 = arith.divf %136, %137 : vector<8x64xf32>
    %139 = vector.extract_strided_slice %34 {offsets = [24, 0], sizes = [8, 64], strides = [1, 1]} : vector<64x64xf32> to vector<8x64xf32>
    %140 = vector.extract_strided_slice %130 {offsets = [0, 64], sizes = [8, 64], strides = [1, 1]} : vector<8x192xf32> to vector<8x64xf32>
    %141 = arith.addf %139, %140 : vector<8x64xf32>
    %142 = arith.negf %141 : vector<8x64xf32>
    %143 = math.exp %142 : vector<8x64xf32>
    %cst_28 = arith.constant 1.000000e+00 : f32
    %144 = vector.broadcast %cst_28 : f32 to vector<8x64xf32>
    %145 = arith.addf %144, %143 : vector<8x64xf32>
    %146 = arith.divf %144, %145 : vector<8x64xf32>
    %147 = vector.extract_strided_slice %35 {offsets = [24, 0], sizes = [8, 64], strides = [1, 1]} : vector<64x64xf32> to vector<8x64xf32>
    %148 = vector.extract_strided_slice %130 {offsets = [0, 128], sizes = [8, 64], strides = [1, 1]} : vector<8x192xf32> to vector<8x64xf32>
    %149 = arith.addf %148, %37 : vector<8x64xf32>
    %150 = arith.mulf %138, %149 : vector<8x64xf32>
    %151 = arith.addf %147, %150 : vector<8x64xf32>
    %152 = math.tanh %151 : vector<8x64xf32>
    %cst_29 = arith.constant 1.000000e+00 : f32
    %153 = vector.broadcast %cst_29 : f32 to vector<8x64xf32>
    %154 = arith.subf %153, %146 : vector<8x64xf32>
    %155 = arith.mulf %154, %152 : vector<8x64xf32>
    %156 = arith.mulf %146, %128 : vector<8x64xf32>
    %157 = arith.addf %155, %156 : vector<8x64xf32>
    %158 = arith.truncf %157 : vector<8x64xf32> to vector<8x64xbf16>
    %cst_30 = arith.constant dense<0.000000e+00> : vector<8x192xf32>
    %159 = tpu.matmul %158, %2, %cst_30 {dimension_numbers = #tpu.dot_dimension_numbers<[1], [0], [0], [1], [0, 0, 1, 1], [], []>} : vector<8x64xbf16>, vector<64x192xbf16>, vector<8x192xf32> -> vector<8x192xf32>
    %160 = vector.extract_strided_slice %33 {offsets = [32, 0], sizes = [8, 64], strides = [1, 1]} : vector<64x64xf32> to vector<8x64xf32>
    %161 = vector.extract_strided_slice %159 {offsets = [0, 0], sizes = [8, 64], strides = [1, 1]} : vector<8x192xf32> to vector<8x64xf32>
    %162 = arith.addf %160, %161 : vector<8x64xf32>
    %163 = arith.negf %162 : vector<8x64xf32>
    %164 = math.exp %163 : vector<8x64xf32>
    %cst_31 = arith.constant 1.000000e+00 : f32
    %165 = vector.broadcast %cst_31 : f32 to vector<8x64xf32>
    %166 = arith.addf %165, %164 : vector<8x64xf32>
    %167 = arith.divf %165, %166 : vector<8x64xf32>
    %168 = vector.extract_strided_slice %34 {offsets = [32, 0], sizes = [8, 64], strides = [1, 1]} : vector<64x64xf32> to vector<8x64xf32>
    %169 = vector.extract_strided_slice %159 {offsets = [0, 64], sizes = [8, 64], strides = [1, 1]} : vector<8x192xf32> to vector<8x64xf32>
    %170 = arith.addf %168, %169 : vector<8x64xf32>
    %171 = arith.negf %170 : vector<8x64xf32>
    %172 = math.exp %171 : vector<8x64xf32>
    %cst_32 = arith.constant 1.000000e+00 : f32
    %173 = vector.broadcast %cst_32 : f32 to vector<8x64xf32>
    %174 = arith.addf %173, %172 : vector<8x64xf32>
    %175 = arith.divf %173, %174 : vector<8x64xf32>
    %176 = vector.extract_strided_slice %35 {offsets = [32, 0], sizes = [8, 64], strides = [1, 1]} : vector<64x64xf32> to vector<8x64xf32>
    %177 = vector.extract_strided_slice %159 {offsets = [0, 128], sizes = [8, 64], strides = [1, 1]} : vector<8x192xf32> to vector<8x64xf32>
    %178 = arith.addf %177, %37 : vector<8x64xf32>
    %179 = arith.mulf %167, %178 : vector<8x64xf32>
    %180 = arith.addf %176, %179 : vector<8x64xf32>
    %181 = math.tanh %180 : vector<8x64xf32>
    %cst_33 = arith.constant 1.000000e+00 : f32
    %182 = vector.broadcast %cst_33 : f32 to vector<8x64xf32>
    %183 = arith.subf %182, %175 : vector<8x64xf32>
    %184 = arith.mulf %183, %181 : vector<8x64xf32>
    %185 = arith.mulf %175, %157 : vector<8x64xf32>
    %186 = arith.addf %184, %185 : vector<8x64xf32>
    %187 = arith.select %40, %186, %157 : vector<8x64xi1>, vector<8x64xf32>
    %188 = arith.truncf %187 : vector<8x64xf32> to vector<8x64xbf16>
    %cst_34 = arith.constant dense<0.000000e+00> : vector<8x192xf32>
    %189 = tpu.matmul %188, %2, %cst_34 {dimension_numbers = #tpu.dot_dimension_numbers<[1], [0], [0], [1], [0, 0, 1, 1], [], []>} : vector<8x64xbf16>, vector<64x192xbf16>, vector<8x192xf32> -> vector<8x192xf32>
    %190 = vector.extract_strided_slice %33 {offsets = [40, 0], sizes = [8, 64], strides = [1, 1]} : vector<64x64xf32> to vector<8x64xf32>
    %191 = vector.extract_strided_slice %189 {offsets = [0, 0], sizes = [8, 64], strides = [1, 1]} : vector<8x192xf32> to vector<8x64xf32>
    %192 = arith.addf %190, %191 : vector<8x64xf32>
    %193 = arith.negf %192 : vector<8x64xf32>
    %194 = math.exp %193 : vector<8x64xf32>
    %cst_35 = arith.constant 1.000000e+00 : f32
    %195 = vector.broadcast %cst_35 : f32 to vector<8x64xf32>
    %196 = arith.addf %195, %194 : vector<8x64xf32>
    %197 = arith.divf %195, %196 : vector<8x64xf32>
    %198 = vector.extract_strided_slice %34 {offsets = [40, 0], sizes = [8, 64], strides = [1, 1]} : vector<64x64xf32> to vector<8x64xf32>
    %199 = vector.extract_strided_slice %189 {offsets = [0, 64], sizes = [8, 64], strides = [1, 1]} : vector<8x192xf32> to vector<8x64xf32>
    %200 = arith.addf %198, %199 : vector<8x64xf32>
    %201 = arith.negf %200 : vector<8x64xf32>
    %202 = math.exp %201 : vector<8x64xf32>
    %cst_36 = arith.constant 1.000000e+00 : f32
    %203 = vector.broadcast %cst_36 : f32 to vector<8x64xf32>
    %204 = arith.addf %203, %202 : vector<8x64xf32>
    %205 = arith.divf %203, %204 : vector<8x64xf32>
    %206 = vector.extract_strided_slice %35 {offsets = [40, 0], sizes = [8, 64], strides = [1, 1]} : vector<64x64xf32> to vector<8x64xf32>
    %207 = vector.extract_strided_slice %189 {offsets = [0, 128], sizes = [8, 64], strides = [1, 1]} : vector<8x192xf32> to vector<8x64xf32>
    %208 = arith.addf %207, %37 : vector<8x64xf32>
    %209 = arith.mulf %197, %208 : vector<8x64xf32>
    %210 = arith.addf %206, %209 : vector<8x64xf32>
    %211 = math.tanh %210 : vector<8x64xf32>
    %cst_37 = arith.constant 1.000000e+00 : f32
    %212 = vector.broadcast %cst_37 : f32 to vector<8x64xf32>
    %213 = arith.subf %212, %205 : vector<8x64xf32>
    %214 = arith.mulf %213, %211 : vector<8x64xf32>
    %215 = arith.mulf %205, %187 : vector<8x64xf32>
    %216 = arith.addf %214, %215 : vector<8x64xf32>
    %217 = arith.select %40, %216, %187 : vector<8x64xi1>, vector<8x64xf32>
    %218 = arith.truncf %217 : vector<8x64xf32> to vector<8x64xbf16>
    %cst_38 = arith.constant dense<0.000000e+00> : vector<8x192xf32>
    %219 = tpu.matmul %218, %2, %cst_38 {dimension_numbers = #tpu.dot_dimension_numbers<[1], [0], [0], [1], [0, 0, 1, 1], [], []>} : vector<8x64xbf16>, vector<64x192xbf16>, vector<8x192xf32> -> vector<8x192xf32>
    %220 = vector.extract_strided_slice %33 {offsets = [48, 0], sizes = [8, 64], strides = [1, 1]} : vector<64x64xf32> to vector<8x64xf32>
    %221 = vector.extract_strided_slice %219 {offsets = [0, 0], sizes = [8, 64], strides = [1, 1]} : vector<8x192xf32> to vector<8x64xf32>
    %222 = arith.addf %220, %221 : vector<8x64xf32>
    %223 = arith.negf %222 : vector<8x64xf32>
    %224 = math.exp %223 : vector<8x64xf32>
    %cst_39 = arith.constant 1.000000e+00 : f32
    %225 = vector.broadcast %cst_39 : f32 to vector<8x64xf32>
    %226 = arith.addf %225, %224 : vector<8x64xf32>
    %227 = arith.divf %225, %226 : vector<8x64xf32>
    %228 = vector.extract_strided_slice %34 {offsets = [48, 0], sizes = [8, 64], strides = [1, 1]} : vector<64x64xf32> to vector<8x64xf32>
    %229 = vector.extract_strided_slice %219 {offsets = [0, 64], sizes = [8, 64], strides = [1, 1]} : vector<8x192xf32> to vector<8x64xf32>
    %230 = arith.addf %228, %229 : vector<8x64xf32>
    %231 = arith.negf %230 : vector<8x64xf32>
    %232 = math.exp %231 : vector<8x64xf32>
    %cst_40 = arith.constant 1.000000e+00 : f32
    %233 = vector.broadcast %cst_40 : f32 to vector<8x64xf32>
    %234 = arith.addf %233, %232 : vector<8x64xf32>
    %235 = arith.divf %233, %234 : vector<8x64xf32>
    %236 = vector.extract_strided_slice %35 {offsets = [48, 0], sizes = [8, 64], strides = [1, 1]} : vector<64x64xf32> to vector<8x64xf32>
    %237 = vector.extract_strided_slice %219 {offsets = [0, 128], sizes = [8, 64], strides = [1, 1]} : vector<8x192xf32> to vector<8x64xf32>
    %238 = arith.addf %237, %37 : vector<8x64xf32>
    %239 = arith.mulf %227, %238 : vector<8x64xf32>
    %240 = arith.addf %236, %239 : vector<8x64xf32>
    %241 = math.tanh %240 : vector<8x64xf32>
    %cst_41 = arith.constant 1.000000e+00 : f32
    %242 = vector.broadcast %cst_41 : f32 to vector<8x64xf32>
    %243 = arith.subf %242, %235 : vector<8x64xf32>
    %244 = arith.mulf %243, %241 : vector<8x64xf32>
    %245 = arith.mulf %235, %217 : vector<8x64xf32>
    %246 = arith.addf %244, %245 : vector<8x64xf32>
    %247 = arith.select %40, %246, %217 : vector<8x64xi1>, vector<8x64xf32>
    %248 = arith.truncf %247 : vector<8x64xf32> to vector<8x64xbf16>
    %cst_42 = arith.constant dense<0.000000e+00> : vector<8x192xf32>
    %249 = tpu.matmul %248, %2, %cst_42 {dimension_numbers = #tpu.dot_dimension_numbers<[1], [0], [0], [1], [0, 0, 1, 1], [], []>} : vector<8x64xbf16>, vector<64x192xbf16>, vector<8x192xf32> -> vector<8x192xf32>
    %250 = vector.extract_strided_slice %33 {offsets = [56, 0], sizes = [8, 64], strides = [1, 1]} : vector<64x64xf32> to vector<8x64xf32>
    %251 = vector.extract_strided_slice %249 {offsets = [0, 0], sizes = [8, 64], strides = [1, 1]} : vector<8x192xf32> to vector<8x64xf32>
    %252 = arith.addf %250, %251 : vector<8x64xf32>
    %253 = arith.negf %252 : vector<8x64xf32>
    %254 = math.exp %253 : vector<8x64xf32>
    %cst_43 = arith.constant 1.000000e+00 : f32
    %255 = vector.broadcast %cst_43 : f32 to vector<8x64xf32>
    %256 = arith.addf %255, %254 : vector<8x64xf32>
    %257 = arith.divf %255, %256 : vector<8x64xf32>
    %258 = vector.extract_strided_slice %34 {offsets = [56, 0], sizes = [8, 64], strides = [1, 1]} : vector<64x64xf32> to vector<8x64xf32>
    %259 = vector.extract_strided_slice %249 {offsets = [0, 64], sizes = [8, 64], strides = [1, 1]} : vector<8x192xf32> to vector<8x64xf32>
    %260 = arith.addf %258, %259 : vector<8x64xf32>
    %261 = arith.negf %260 : vector<8x64xf32>
    %262 = math.exp %261 : vector<8x64xf32>
    %cst_44 = arith.constant 1.000000e+00 : f32
    %263 = vector.broadcast %cst_44 : f32 to vector<8x64xf32>
    %264 = arith.addf %263, %262 : vector<8x64xf32>
    %265 = arith.divf %263, %264 : vector<8x64xf32>
    %266 = vector.extract_strided_slice %35 {offsets = [56, 0], sizes = [8, 64], strides = [1, 1]} : vector<64x64xf32> to vector<8x64xf32>
    %267 = vector.extract_strided_slice %249 {offsets = [0, 128], sizes = [8, 64], strides = [1, 1]} : vector<8x192xf32> to vector<8x64xf32>
    %268 = arith.addf %267, %37 : vector<8x64xf32>
    %269 = arith.mulf %257, %268 : vector<8x64xf32>
    %270 = arith.addf %266, %269 : vector<8x64xf32>
    %271 = math.tanh %270 : vector<8x64xf32>
    %cst_45 = arith.constant 1.000000e+00 : f32
    %272 = vector.broadcast %cst_45 : f32 to vector<8x64xf32>
    %273 = arith.subf %272, %265 : vector<8x64xf32>
    %274 = arith.mulf %273, %271 : vector<8x64xf32>
    %275 = arith.mulf %265, %247 : vector<8x64xf32>
    %276 = arith.addf %274, %275 : vector<8x64xf32>
    %277 = arith.select %40, %276, %247 : vector<8x64xi1>, vector<8x64xf32>
    %c0_46 = arith.constant 0 : index
    %c0_47 = arith.constant 0 : index
    %278 = vector.load %arg1[%c0_46, %c0_47] : memref<16x32xf32, #tpu.memory_space<vmem>>, vector<16x32xf32>
    %279 = arith.truncf %277 : vector<8x64xf32> to vector<8x64xbf16>
    %cst_48 = arith.constant dense<0.000000e+00> : vector<8x64xf32>
    %280 = tpu.matmul %279, %4, %cst_48 {dimension_numbers = #tpu.dot_dimension_numbers<[1], [0], [0], [1], [0, 0, 1, 1], [], []>} : vector<8x64xbf16>, vector<64x64xbf16>, vector<8x64xf32> -> vector<8x64xf32>
    %281 = vector.broadcast %16 : vector<1x64xf32> to vector<8x64xf32>
    %282 = arith.addf %280, %281 : vector<8x64xf32>
    %283 = arith.truncf %278 : vector<16x32xf32> to vector<16x32xbf16>
    %cst_49 = arith.constant dense<0.000000e+00> : vector<16x64xf32>
    %284 = tpu.matmul %283, %6, %cst_49 {dimension_numbers = #tpu.dot_dimension_numbers<[1], [0], [0], [1], [0, 0, 1, 1], [], []>} : vector<16x32xbf16>, vector<32x64xbf16>, vector<16x64xf32> -> vector<16x64xf32>
    %285 = vector.extract_strided_slice %284 {offsets = [0, 0], sizes = [8, 64], strides = [1, 1]} : vector<16x64xf32> to vector<8x64xf32>
    %286 = vector.extract_strided_slice %282 {offsets = [0, 0], sizes = [1, 64], strides = [1, 1]} : vector<8x64xf32> to vector<1x64xf32>
    %287 = vector.broadcast %286 : vector<1x64xf32> to vector<8x64xf32>
    %288 = arith.addf %285, %287 : vector<8x64xf32>
    %289 = math.tanh %288 : vector<8x64xf32>
    %290 = vector.broadcast %20 : vector<1x64xf32> to vector<8x64xf32>
    %291 = arith.mulf %289, %290 : vector<8x64xf32>
    %292 = vector.extract_strided_slice %291 {offsets = [0, 0], sizes = [8, 32], strides = [1, 1]} : vector<8x64xf32> to vector<8x32xf32>
    %cst_50 = arith.constant dense<0.000000e+00> : vector<8xf32>
    %293 = vector.multi_reduction <add>, %292, %cst_50 [1] : vector<8x32xf32> to vector<8xf32>
    %294 = vector.shape_cast %293 : vector<8xf32> to vector<8x1xf32>
    %295 = vector.extract_strided_slice %291 {offsets = [0, 32], sizes = [8, 32], strides = [1, 1]} : vector<8x64xf32> to vector<8x32xf32>
    %cst_51 = arith.constant dense<0.000000e+00> : vector<8xf32>
    %296 = vector.multi_reduction <add>, %295, %cst_51 [1] : vector<8x32xf32> to vector<8xf32>
    %297 = vector.shape_cast %296 : vector<8xf32> to vector<8x1xf32>
    %298 = vector.extract_strided_slice %278 {offsets = [0, 0], sizes = [8, 32], strides = [1, 1]} : vector<16x32xf32> to vector<8x32xf32>
    %cst_52 = arith.constant dense<0xFF800000> : vector<1xf32>
    %299 = vector.multi_reduction <maximumf>, %294, %cst_52 [0] : vector<8x1xf32> to vector<1xf32>
    %300 = vector.shape_cast %299 : vector<1xf32> to vector<1x1xf32>
    %301 = vector.broadcast %300 : vector<1x1xf32> to vector<8x1xf32>
    %302 = arith.subf %294, %301 : vector<8x1xf32>
    %303 = math.exp %302 : vector<8x1xf32>
    %cst_53 = arith.constant dense<0.000000e+00> : vector<1xf32>
    %304 = vector.multi_reduction <add>, %303, %cst_53 [0] : vector<8x1xf32> to vector<1xf32>
    %305 = vector.shape_cast %304 : vector<1xf32> to vector<1x1xf32>
    %306 = tpu.reciprocal %305 {approx = true} : vector<1x1xf32> -> vector<1x1xf32>
    %307 = vector.broadcast %306 : vector<1x1xf32> to vector<8x1xf32>
    %308 = arith.mulf %303, %307 : vector<8x1xf32>
    %309 = vector.broadcast %308 : vector<8x1xf32> to vector<8x32xf32>
    %310 = arith.mulf %309, %298 : vector<8x32xf32>
    %cst_54 = arith.constant dense<0.000000e+00> : vector<32xf32>
    %311 = vector.multi_reduction <add>, %310, %cst_54 [0] : vector<8x32xf32> to vector<32xf32>
    %312 = vector.shape_cast %311 : vector<32xf32> to vector<1x32xf32>
    %cst_55 = arith.constant dense<0xFF800000> : vector<1xf32>
    %313 = vector.multi_reduction <maximumf>, %297, %cst_55 [0] : vector<8x1xf32> to vector<1xf32>
    %314 = vector.shape_cast %313 : vector<1xf32> to vector<1x1xf32>
    %315 = vector.broadcast %314 : vector<1x1xf32> to vector<8x1xf32>
    %316 = arith.subf %297, %315 : vector<8x1xf32>
    %317 = math.exp %316 : vector<8x1xf32>
    %cst_56 = arith.constant dense<0.000000e+00> : vector<1xf32>
    %318 = vector.multi_reduction <add>, %317, %cst_56 [0] : vector<8x1xf32> to vector<1xf32>
    %319 = vector.shape_cast %318 : vector<1xf32> to vector<1x1xf32>
    %320 = tpu.reciprocal %319 {approx = true} : vector<1x1xf32> -> vector<1x1xf32>
    %321 = vector.broadcast %320 : vector<1x1xf32> to vector<8x1xf32>
    %322 = arith.mulf %317, %321 : vector<8x1xf32>
    %323 = vector.broadcast %322 : vector<8x1xf32> to vector<8x32xf32>
    %324 = arith.mulf %323, %298 : vector<8x32xf32>
    %cst_57 = arith.constant dense<0.000000e+00> : vector<32xf32>
    %325 = vector.multi_reduction <add>, %324, %cst_57 [0] : vector<8x32xf32> to vector<32xf32>
    %326 = vector.shape_cast %325 : vector<32xf32> to vector<1x32xf32>
    %327 = vector.extract_strided_slice %284 {offsets = [8, 0], sizes = [8, 64], strides = [1, 1]} : vector<16x64xf32> to vector<8x64xf32>
    %328 = vector.extract_strided_slice %282 {offsets = [1, 0], sizes = [1, 64], strides = [1, 1]} : vector<8x64xf32> to vector<1x64xf32>
    %329 = vector.broadcast %328 : vector<1x64xf32> to vector<8x64xf32>
    %330 = arith.addf %327, %329 : vector<8x64xf32>
    %331 = math.tanh %330 : vector<8x64xf32>
    %332 = vector.broadcast %20 : vector<1x64xf32> to vector<8x64xf32>
    %333 = arith.mulf %331, %332 : vector<8x64xf32>
    %334 = vector.extract_strided_slice %333 {offsets = [0, 0], sizes = [8, 32], strides = [1, 1]} : vector<8x64xf32> to vector<8x32xf32>
    %cst_58 = arith.constant dense<0.000000e+00> : vector<8xf32>
    %335 = vector.multi_reduction <add>, %334, %cst_58 [1] : vector<8x32xf32> to vector<8xf32>
    %336 = vector.shape_cast %335 : vector<8xf32> to vector<8x1xf32>
    %337 = vector.extract_strided_slice %333 {offsets = [0, 32], sizes = [8, 32], strides = [1, 1]} : vector<8x64xf32> to vector<8x32xf32>
    %cst_59 = arith.constant dense<0.000000e+00> : vector<8xf32>
    %338 = vector.multi_reduction <add>, %337, %cst_59 [1] : vector<8x32xf32> to vector<8xf32>
    %339 = vector.shape_cast %338 : vector<8xf32> to vector<8x1xf32>
    %340 = vector.extract_strided_slice %278 {offsets = [8, 0], sizes = [8, 32], strides = [1, 1]} : vector<16x32xf32> to vector<8x32xf32>
    %cst_60 = arith.constant dense<0xFF800000> : vector<1xf32>
    %341 = vector.multi_reduction <maximumf>, %336, %cst_60 [0] : vector<8x1xf32> to vector<1xf32>
    %342 = vector.shape_cast %341 : vector<1xf32> to vector<1x1xf32>
    %343 = vector.broadcast %342 : vector<1x1xf32> to vector<8x1xf32>
    %344 = arith.subf %336, %343 : vector<8x1xf32>
    %345 = math.exp %344 : vector<8x1xf32>
    %cst_61 = arith.constant dense<0.000000e+00> : vector<1xf32>
    %346 = vector.multi_reduction <add>, %345, %cst_61 [0] : vector<8x1xf32> to vector<1xf32>
    %347 = vector.shape_cast %346 : vector<1xf32> to vector<1x1xf32>
    %348 = tpu.reciprocal %347 {approx = true} : vector<1x1xf32> -> vector<1x1xf32>
    %349 = vector.broadcast %348 : vector<1x1xf32> to vector<8x1xf32>
    %350 = arith.mulf %345, %349 : vector<8x1xf32>
    %351 = vector.broadcast %350 : vector<8x1xf32> to vector<8x32xf32>
    %352 = arith.mulf %351, %340 : vector<8x32xf32>
    %cst_62 = arith.constant dense<0.000000e+00> : vector<32xf32>
    %353 = vector.multi_reduction <add>, %352, %cst_62 [0] : vector<8x32xf32> to vector<32xf32>
    %354 = vector.shape_cast %353 : vector<32xf32> to vector<1x32xf32>
    %cst_63 = arith.constant dense<0xFF800000> : vector<1xf32>
    %355 = vector.multi_reduction <maximumf>, %339, %cst_63 [0] : vector<8x1xf32> to vector<1xf32>
    %356 = vector.shape_cast %355 : vector<1xf32> to vector<1x1xf32>
    %357 = vector.broadcast %356 : vector<1x1xf32> to vector<8x1xf32>
    %358 = arith.subf %339, %357 : vector<8x1xf32>
    %359 = math.exp %358 : vector<8x1xf32>
    %cst_64 = arith.constant dense<0.000000e+00> : vector<1xf32>
    %360 = vector.multi_reduction <add>, %359, %cst_64 [0] : vector<8x1xf32> to vector<1xf32>
    %361 = vector.shape_cast %360 : vector<1xf32> to vector<1x1xf32>
    %362 = tpu.reciprocal %361 {approx = true} : vector<1x1xf32> -> vector<1x1xf32>
    %363 = vector.broadcast %362 : vector<1x1xf32> to vector<8x1xf32>
    %364 = arith.mulf %359, %363 : vector<8x1xf32>
    %365 = vector.broadcast %364 : vector<8x1xf32> to vector<8x32xf32>
    %366 = arith.mulf %365, %340 : vector<8x32xf32>
    %cst_65 = arith.constant dense<0.000000e+00> : vector<32xf32>
    %367 = vector.multi_reduction <add>, %366, %cst_65 [0] : vector<8x32xf32> to vector<32xf32>
    %368 = vector.shape_cast %367 : vector<32xf32> to vector<1x32xf32>
    %369 = tpu.concatenate %312, %354 in 0 : vector<1x32xf32>, vector<1x32xf32> -> vector<2x32xf32>
    %370 = tpu.concatenate %326, %368 in 0 : vector<1x32xf32>, vector<1x32xf32> -> vector<2x32xf32>
    %371 = vector.extract_strided_slice %277 {offsets = [0, 0], sizes = [2, 32], strides = [1, 1]} : vector<8x64xf32> to vector<2x32xf32>
    %372 = vector.extract_strided_slice %277 {offsets = [0, 32], sizes = [2, 32], strides = [1, 1]} : vector<8x64xf32> to vector<2x32xf32>
    %373 = arith.addf %371, %372 : vector<2x32xf32>
    %374 = arith.truncf %369 : vector<2x32xf32> to vector<2x32xbf16>
    %cst_66 = arith.constant dense<0.000000e+00> : vector<2x32xf32>
    %375 = tpu.matmul %374, %8, %cst_66 {dimension_numbers = #tpu.dot_dimension_numbers<[1], [0], [0], [1], [0, 0, 1, 1], [], []>} : vector<2x32xbf16>, vector<32x32xbf16>, vector<2x32xf32> -> vector<2x32xf32>
    %376 = arith.addf %373, %375 : vector<2x32xf32>
    %377 = arith.truncf %370 : vector<2x32xf32> to vector<2x32xbf16>
    %cst_67 = arith.constant dense<0.000000e+00> : vector<2x32xf32>
    %378 = tpu.matmul %377, %10, %cst_67 {dimension_numbers = #tpu.dot_dimension_numbers<[1], [0], [0], [1], [0, 0, 1, 1], [], []>} : vector<2x32xbf16>, vector<32x32xbf16>, vector<2x32xf32> -> vector<2x32xf32>
    %379 = arith.addf %376, %378 : vector<2x32xf32>
    %380 = arith.truncf %379 : vector<2x32xf32> to vector<2x32xbf16>
    %cst_68 = arith.constant dense<0.000000e+00> : vector<2x64xf32>
    %381 = tpu.matmul %380, %12, %cst_68 {dimension_numbers = #tpu.dot_dimension_numbers<[1], [0], [0], [1], [0, 0, 1, 1], [], []>} : vector<2x32xbf16>, vector<32x64xbf16>, vector<2x64xf32> -> vector<2x64xf32>
    %382 = vector.broadcast %18 : vector<1x64xf32> to vector<2x64xf32>
    %383 = arith.addf %381, %382 : vector<2x64xf32>
    %cst_69 = arith.constant 0.000000e+00 : f32
    %384 = vector.broadcast %cst_69 : f32 to vector<2x64xf32>
    %385 = arith.maximumf %383, %384 : vector<2x64xf32>
    %386 = arith.truncf %385 : vector<2x64xf32> to vector<2x64xbf16>
    %cst_70 = arith.constant dense<0.000000e+00> : vector<2x16xf32>
    %387 = tpu.matmul %386, %14, %cst_70 {dimension_numbers = #tpu.dot_dimension_numbers<[1], [0], [0], [1], [0, 0, 1, 1], [], []>} : vector<2x64xbf16>, vector<64x16xbf16>, vector<2x16xf32> -> vector<2x16xf32>
    %388 = vector.broadcast %19 : vector<1x16xf32> to vector<2x16xf32>
    %389 = arith.addf %387, %388 : vector<2x16xf32>
    %c0_71 = arith.constant 0 : index
    %c0_72 = arith.constant 0 : index
    %390 = vector.load %arg4[%c0_71, %c0_72] : memref<2x16xf32, #tpu.memory_space<vmem>>, vector<2x16xf32>
    tpu.vector_store %arg4[%c0_71, %c0_72], %389 {strides = array<i32>} : memref<2x16xf32, #tpu.memory_space<vmem>>, vector<2x16xf32>,
    return
  }
}

</mosaic_0001>

<llo_original>
// kernel: stacked_attention_model_forward.1
$region0: #{stacked_attention_model_forward.1}
  #allocation0 [shape = 'u32[]', space=smem, size = 0x4, offset = 0x4, fixed_abs, tag = 'smem constant byte address 0x4 - core index']
  #allocation1 [shape = 'u32[72,128]{1,0:T(1,128)}', space=vmem, size = 0x9000, scoped, tag = 'internal scratch']
  %s0 = inlined_call_operand.vmem [shape: s32[64,2], index: 0, kind: input, shape index: {}]
  %s1 = inlined_call_operand.vmem [shape: f32[16,32], index: 1, kind: input, shape index: {}]
  %s2 = inlined_call_operand.vmem [shape: f32[160,192], index: 2, kind: input, shape index: {}]
  %s3 = inlined_call_operand.vmem [shape: f32[264,64], index: 3, kind: input, shape index: {}]
  %s4 = inlined_call_operand.hbm [shape: f32[2,16], index: 4, kind: output, shape index: {}]
  %s5 = sld [smem:[#allocation0]]
  $region26: #{stacked_attention_model_forward.1} parent=0
    _
  %s7 = ssub.s32 1, %s5
  %s8 = scalar_select 0, %s7, %s5
  $region1: #{stacked_attention_model_forward.1} parent=0
    #allocation2 [shape = 'u8[1024]{0}', space=vmem, size = 0x400, scoped, tag = 'output window, operand 0, single buffered']
    #allocation3 [shape = 's32[1]{0}', space=sflag, size = 0x4, scoped, tag = 'scoped memory for stacked_attention_model_forward.1']
    %9 = vsyncpa [#allocation3], 0
    // Predicated region
    $region2: #{stacked_attention_model_forward.1} parent=1 // pred_check
      _
    $region3: #{stacked_attention_model_forward.1} parent=1 // pred_check_branch
      %11 = sbr.rel (0) target = $region5
    $region4: #{stacked_attention_model_forward.1} parent=1 // pred_region
      _
    $region5: #{stacked_attention_model_forward.1} parent=1 // pred_fallthru
      _
    // Predicated region
    $region6: #{stacked_attention_model_forward.1} parent=1 // pred_check
      _
    $region7: #{stacked_attention_model_forward.1} parent=1 // pred_check_branch
      %13 = sbr.rel (0) target = $region9
    $region8: #{stacked_attention_model_forward.1} parent=1 // pred_region
      _
    $region9: #{stacked_attention_model_forward.1} parent=1 // pred_fallthru
      _
    // Predicated region
    $region10: #{stacked_attention_model_forward.1} parent=1 // pred_check
      _
    $region11: #{stacked_attention_model_forward.1} parent=1 // pred_check_branch
      %15 = sbr.rel (0) target = $region13
    $region12: #{stacked_attention_model_forward.1} parent=1 // pred_region
      _
    $region13: #{stacked_attention_model_forward.1} parent=1 // pred_fallthru
      _
    // Predicated region
    $region14: #{stacked_attention_model_forward.1} parent=1 // pred_check
      _
    $region15: #{stacked_attention_model_forward.1} parent=1 // pred_check_branch
      %17 = sbr.rel (0) target = $region17
    $region16: #{stacked_attention_model_forward.1} parent=1 // pred_region
      _
    $region17: #{stacked_attention_model_forward.1} parent=1 // pred_fallthru
      _
    %v19 = vld [vmem:[%s2] sm:$0xff]
    %v20 = vld [vmem:[%s2 + $0x8] sm:$0xff]
    %v21 = vld [vmem:[%s2 + $0x10] sm:$0xff]
    %v22 = vld [vmem:[%s2 + $0x18] sm:$0xff]
    %v23 = vld [vmem:[%s2 + $0x20] sm:$0xff]
    %v24 = vld [vmem:[%s2 + $0x28] sm:$0xff]
    %v25 = vld [vmem:[%s2 + $0x30] sm:$0xff]
    %v26 = vld [vmem:[%s2 + $0x38] sm:$0xff]
    %v27 = vld [vmem:[%s2 + $0x40] sm:$0xff]
    %v28 = vld [vmem:[%s2 + $0x48] sm:$0xff]
    %v29 = vld [vmem:[%s2 + $0x50] sm:$0xff]
    %v30 = vld [vmem:[%s2 + $0x58] sm:$0xff]
    %v31 = vld [vmem:[%s2 + $0x60] sm:$0xff]
    %v32 = vld [vmem:[%s2 + $0x68] sm:$0xff]
    %v33 = vld [vmem:[%s2 + $0x70] sm:$0xff]
    %v34 = vld [vmem:[%s2 + $0x78] sm:$0xff]
    %v35 = vld [vmem:[%s2 + $0x80] sm:$0xff]
    %v36 = vld [vmem:[%s2 + $0x88] sm:$0xff]
    %v37 = vld [vmem:[%s2 + $0x90] sm:$0xff]
    %v38 = vld [vmem:[%s2 + $0x98] sm:$0xff]
    %v39 = vld [vmem:[%s2 + $0xa0] sm:$0xff]
    %v40 = vld [vmem:[%s2 + $0xa8] sm:$0xff]
    %v41 = vld [vmem:[%s2 + $0xb0] sm:$0xff]
    %v42 = vld [vmem:[%s2 + $0xb8] sm:$0xff]
    %v43 = vld [vmem:[%s2 + $0xc0] sm:$0xff]
    %v44 = vld [vmem:[%s2 + $0xc8] sm:$0xff]
    %v45 = vld [vmem:[%s2 + $0xd0] sm:$0xff]
    %v46 = vld [vmem:[%s2 + $0xd8] sm:$0xff]
    %v47 = vld [vmem:[%s2 + $0xe0] sm:$0xff]
    %v48 = vld [vmem:[%s2 + $0xe8] sm:$0xff]
    %v49 = vld [vmem:[%s2 + $0xf0] sm:$0xff]
    %v50 = vld [vmem:[%s2 + $0xf8] sm:$0xff]
    %v51 = vld [vmem:[%s2 + $0x100] sm:$0xff]
    %v52 = vld [vmem:[%s2 + $0x108] sm:$0xff]
    %v53 = vld [vmem:[%s2 + $0x110] sm:$0xff]
    %v54 = vld [vmem:[%s2 + $0x118] sm:$0xff]
    %v55 = vld [vmem:[%s2 + $0x120] sm:$0xff]
    %v56 = vld [vmem:[%s2 + $0x128] sm:$0xff]
    %v57 = vld [vmem:[%s2 + $0x130] sm:$0xff]
    %v58 = vld [vmem:[%s2 + $0x138] sm:$0xff]
    %v59 = vpack.c.bf16 %v45, %v43
    %v60 = vpack.c.bf16 %v46, %v44
    %v61 = vpack.c.bf16 %v49, %v47
    %v62 = vpack.c.bf16 %v50, %v48
    %v63 = vpack.c.bf16 %v53, %v51
    %v64 = vpack.c.bf16 %v54, %v52
    %v65 = vpack.c.bf16 %v57, %v55
    %v66 = vpack.c.bf16 %v58, %v56
    %v67 = vld [vmem:[%s3] sm:$0xff]
    %v68 = vld [vmem:[%s3 + $0x8] sm:$0xff]
    %v69 = vld [vmem:[%s3 + $0x10] sm:$0xff]
    %v70 = vld [vmem:[%s3 + $0x18] sm:$0xff]
    %v71 = vld [vmem:[%s3 + $0x20] sm:$0xff]
    %v72 = vld [vmem:[%s3 + $0x28] sm:$0xff]
    %v73 = vld [vmem:[%s3 + $0x30] sm:$0xff]
    %v74 = vld [vmem:[%s3 + $0x38] sm:$0xff]
    %v75 = vpack.c.bf16 %v68, %v67
    %v76 = vpack.c.bf16 %v70, %v69
    %v77 = vpack.c.bf16 %v72, %v71
    %v78 = vpack.c.bf16 %v74, %v73
    %v79 = vld [vmem:[%s3 + $0x40] sm:$0xff]
    %v80 = vld [vmem:[%s3 + $0x48] sm:$0xff]
    %v81 = vld [vmem:[%s3 + $0x50] sm:$0xff]
    %v82 = vld [vmem:[%s3 + $0x58] sm:$0xff]
    %v83 = vpack.c.bf16 %v80, %v79
    %v84 = vpack.c.bf16 %v82, %v81
    %v85 = vld [vmem:[%s3 + $0x60] sm:$0xff]
    %v86 = vld [vmem:[%s3 + $0x68] sm:$0xff]
    %v87 = vld [vmem:[%s3 + $0x70] sm:$0xff]
    %v88 = vld [vmem:[%s3 + $0x78] sm:$0xff]
    %v89 = vpack.c.bf16 %v86, %v85
    %v90 = vpack.c.bf16 %v88, %v87
    %v91 = vld [vmem:[%s3 + $0x80] sm:$0xff]
    %v92 = vld [vmem:[%s3 + $0x88] sm:$0xff]
    %v93 = vld [vmem:[%s3 + $0x90] sm:$0xff]
    %v94 = vld [vmem:[%s3 + $0x98] sm:$0xff]
    %v95 = vpack.c.bf16 %v92, %v91
    %v96 = vpack.c.bf16 %v94, %v93
    %v97 = vld [vmem:[%s3 + $0xa0] sm:$0xff]
    %v98 = vld [vmem:[%s3 + $0xa8] sm:$0xff]
    %v99 = vld [vmem:[%s3 + $0xb0] sm:$0xff]
    %v100 = vld [vmem:[%s3 + $0xb8] sm:$0xff]
    %v101 = vpack.c.bf16 %v98, %v97
    %v102 = vpack.c.bf16 %v100, %v99
    %v103 = vld [vmem:[%s3 + $0xc0] sm:$0xff]
    %v104 = vld [vmem:[%s3 + $0xc8] sm:$0xff]
    %v105 = vld [vmem:[%s3 + $0xd0] sm:$0xff]
    %v106 = vld [vmem:[%s3 + $0xd8] sm:$0xff]
    %v107 = vld [vmem:[%s3 + $0xe0] sm:$0xff]
    %v108 = vld [vmem:[%s3 + $0xe8] sm:$0xff]
    %v109 = vld [vmem:[%s3 + $0xf0] sm:$0xff]
    %v110 = vld [vmem:[%s3 + $0xf8] sm:$0xff]
    %v111 = vpack.c.bf16 %v104, %v103
    %v112 = vpack.c.bf16 %v106, %v105
    %v113 = vpack.c.bf16 %v108, %v107
    %v114 = vpack.c.bf16 %v110, %v109
    %v115 = vld [vmem:[%s3 + $0x100] sm:$0xff]
    %v116 = vld [vmem:[%s0] sm:$0xff]
    %v117 = vld [vmem:[%s0 + $0x8] sm:$0xff]
    %v118 = vld [vmem:[%s0 + $0x10] sm:$0xff]
    %v119 = vld [vmem:[%s0 + $0x18] sm:$0xff]
    %v120 = vld [vmem:[%s0 + $0x20] sm:$0xff]
    %v121 = vld [vmem:[%s0 + $0x28] sm:$0xff]
    %v122 = vld [vmem:[%s0 + $0x30] sm:$0xff]
    %v123 = vld [vmem:[%s0 + $0x38] sm:$0xff]
    %v124 = vlaneseq
    %v125 = vand.u32 %v124, 127
    %126 = vset.pattern.permute.xlu0 0
    %127 = vperm.xlu0 %126, %v116
    %v128 = vpop.permute.xlu0 %127
    %129 = vset.pattern.permute.xlu0 0
    %130 = vperm.xlu0 %129, %v117
    %v131 = vpop.permute.xlu0 %130
    %132 = vset.pattern.permute.xlu0 0
    %133 = vperm.xlu0 %132, %v118
    %v134 = vpop.permute.xlu0 %133
    %135 = vset.pattern.permute.xlu0 0
    %136 = vperm.xlu0 %135, %v119
    %v137 = vpop.permute.xlu0 %136
    %138 = vset.pattern.permute.xlu0 0
    %139 = vperm.xlu0 %138, %v120
    %v140 = vpop.permute.xlu0 %139
    %141 = vset.pattern.permute.xlu0 0
    %142 = vperm.xlu0 %141, %v121
    %v143 = vpop.permute.xlu0 %142
    %144 = vset.pattern.permute.xlu0 0
    %145 = vperm.xlu0 %144, %v122
    %v146 = vpop.permute.xlu0 %145
    %147 = vset.pattern.permute.xlu0 0
    %148 = vperm.xlu0 %147, %v123
    %v149 = vpop.permute.xlu0 %148
    %vm150 = vcmp.eq.s32.totalorder %v125, %v128
    %vm151 = vcmp.eq.s32.totalorder %v125, %v131
    %vm152 = vcmp.eq.s32.totalorder %v125, %v134
    %vm153 = vcmp.eq.s32.totalorder %v125, %v137
    %vm154 = vcmp.eq.s32.totalorder %v125, %v140
    %vm155 = vcmp.eq.s32.totalorder %v125, %v143
    %vm156 = vcmp.eq.s32.totalorder %v125, %v146
    %vm157 = vcmp.eq.s32.totalorder %v125, %v149
    %158 = vset.pattern.permute.xlu0 1
    %159 = vperm.xlu0 %158, %v116
    %v160 = vpop.permute.xlu0 %159
    %161 = vset.pattern.permute.xlu0 1
    %162 = vperm.xlu0 %161, %v117
    %v163 = vpop.permute.xlu0 %162
    %164 = vset.pattern.permute.xlu0 1
    %165 = vperm.xlu0 %164, %v118
    %v166 = vpop.permute.xlu0 %165
    %167 = vset.pattern.permute.xlu0 1
    %168 = vperm.xlu0 %167, %v119
    %v169 = vpop.permute.xlu0 %168
    %170 = vset.pattern.permute.xlu0 1
    %171 = vperm.xlu0 %170, %v120
    %v172 = vpop.permute.xlu0 %171
    %173 = vset.pattern.permute.xlu0 1
    %174 = vperm.xlu0 %173, %v121
    %v175 = vpop.permute.xlu0 %174
    %176 = vset.pattern.permute.xlu0 1
    %177 = vperm.xlu0 %176, %v122
    %v178 = vpop.permute.xlu0 %177
    %179 = vset.pattern.permute.xlu0 1
    %180 = vperm.xlu0 %179, %v123
    %v181 = vpop.permute.xlu0 %180
    %vm182 = vcmp.eq.s32.totalorder %v125, %v160
    %vm183 = vcmp.eq.s32.totalorder %v125, %v163
    %vm184 = vcmp.eq.s32.totalorder %v125, %v166
    %vm185 = vcmp.eq.s32.totalorder %v125, %v169
    %vm186 = vcmp.eq.s32.totalorder %v125, %v172
    %vm187 = vcmp.eq.s32.totalorder %v125, %v175
    %vm188 = vcmp.eq.s32.totalorder %v125, %v178
    %vm189 = vcmp.eq.s32.totalorder %v125, %v181
    %vm190 = vmor %vm150, %vm182
    %vm191 = vmor %vm151, %vm183
    %vm192 = vmor %vm152, %vm184
    %vm193 = vmor %vm153, %vm185
    %vm194 = vmor %vm154, %vm186
    %vm195 = vmor %vm155, %vm187
    %vm196 = vmor %vm156, %vm188
    %vm197 = vmor %vm157, %vm189
    %v198 = vsel %vm190, 1, 0
    %v199 = vsel %vm191, 1, 0
    %v200 = vsel %vm192, 1, 0
    %v201 = vsel %vm193, 1, 0
    %v202 = vsel %vm194, 1, 0
    %v203 = vsel %vm195, 1, 0
    %v204 = vsel %vm196, 1, 0
    %v205 = vsel %vm197, 1, 0
    %v206 = vcvt.s32.f32 %v198
    %v207 = vcvt.s32.f32 %v199
    %v208 = vcvt.s32.f32 %v200
    %v209 = vcvt.s32.f32 %v201
    %v210 = vcvt.s32.f32 %v202
    %v211 = vcvt.s32.f32 %v203
    %v212 = vcvt.s32.f32 %v204
    %v213 = vcvt.s32.f32 %v205
    %vm214 = vcmask 785408
    %v216 = vsel %vm214, %v206, 0
    %v219 = vsel %vm214, %v207, 0
    %v222 = vsel %vm214, %v208, 0
    %v225 = vsel %vm214, %v209, 0
    %v228 = vsel %vm214, %v210, 0
    %v231 = vsel %vm214, %v211, 0
    %v234 = vsel %vm214, %v212, 0
    %v237 = vsel %vm214, %v213, 0
    %239 = vmatpush.msra.mxu0 0.0
    %240 = vmatpush.msra.mxu0 0.0
    %241 = vmatpush.msra.mxu0 0.0
    %242 = vmatpush.msra.mxu0 0.0
    %243 = vmatpush.msra.mxu0 %v41
    %244 = vmatpush.msra.mxu0 %v39
    %245 = vmatpush.msra.mxu0 %v37
    %246 = vmatpush.msra.mxu0 %v35
    %247 = vmatpush.msra.mxu0 %v33
    %248 = vmatpush.msra.mxu0 %v31
    %249 = vmatpush.msra.mxu0 %v29
    %250 = vmatpush.msra.mxu0 %v27
    %251 = vmatpush.msra.mxu0 %v25
    %252 = vmatpush.msra.mxu0 %v23
    %253 = vmatpush.msra.mxu0 %v21
    %254 = vmatpush.msra.mxu0 %v19
    %255 = vmatmul.f32.gmra.mxu0 %v216
    %v256 = vpop.f32.mrf.mxu0
    %v257 = vadd.f32 0.0, %v256
    %258 = vmatmul.f32.gmra.mxu0 %v219
    %v259 = vpop.f32.mrf.mxu0
    %v260 = vadd.f32 0.0, %v259
    %261 = vmatmul.f32.gmra.mxu0 %v222
    %v262 = vpop.f32.mrf.mxu0
    %v263 = vadd.f32 0.0, %v262
    %264 = vmatmul.f32.gmra.mxu0 %v225
    %v265 = vpop.f32.mrf.mxu0
    %v266 = vadd.f32 0.0, %v265
    %267 = vmatmul.f32.gmra.mxu0 %v228
    %v268 = vpop.f32.mrf.mxu0
    %v269 = vadd.f32 0.0, %v268
    %270 = vmatmul.f32.gmra.mxu0 %v231
    %v271 = vpop.f32.mrf.mxu0
    %v272 = vadd.f32 0.0, %v271
    %273 = vmatmul.f32.gmra.mxu0 %v234
    %v274 = vpop.f32.mrf.mxu0
    %v275 = vadd.f32 0.0, %v274
    %276 = vmatmul.f32.gmra.mxu0 %v237
    %v277 = vpop.f32.mrf.mxu0
    %v278 = vadd.f32 0.0, %v277
    %279 = vdwg.mxu0
    %280 = vmatpush.msra.mxu0 0.0
    %281 = vmatpush.msra.mxu0 0.0
    %282 = vmatpush.msra.mxu0 0.0
    %283 = vmatpush.msra.mxu0 0.0
    %284 = vmatpush.msra.mxu0 %v42
    %285 = vmatpush.msra.mxu0 %v40
    %286 = vmatpush.msra.mxu0 %v38
    %287 = vmatpush.msra.mxu0 %v36
    %288 = vmatpush.msra.mxu0 %v34
    %289 = vmatpush.msra.mxu0 %v32
    %290 = vmatpush.msra.mxu0 %v30
    %291 = vmatpush.msra.mxu0 %v28
    %292 = vmatpush.msra.mxu0 %v26
    %293 = vmatpush.msra.mxu0 %v24
    %294 = vmatpush.msra.mxu0 %v22
    %295 = vmatpush.msra.mxu0 %v20
    %296 = vmatmul.f32.gmra.mxu0 %v216
    %v297 = vpop.f32.mrf.mxu0
    %v298 = vadd.f32 0.0, %v297
    %299 = vmatmul.f32.gmra.mxu0 %v219
    %v300 = vpop.f32.mrf.mxu0
    %v301 = vadd.f32 0.0, %v300
    %302 = vmatmul.f32.gmra.mxu0 %v222
    %v303 = vpop.f32.mrf.mxu0
    %v304 = vadd.f32 0.0, %v303
    %305 = vmatmul.f32.gmra.mxu0 %v225
    %v306 = vpop.f32.mrf.mxu0
    %v307 = vadd.f32 0.0, %v306
    %308 = vmatmul.f32.gmra.mxu0 %v228
    %v309 = vpop.f32.mrf.mxu0
    %v310 = vadd.f32 0.0, %v309
    %311 = vmatmul.f32.gmra.mxu0 %v231
    %v312 = vpop.f32.mrf.mxu0
    %v313 = vadd.f32 0.0, %v312
    %314 = vmatmul.f32.gmra.mxu0 %v234
    %v315 = vpop.f32.mrf.mxu0
    %v316 = vadd.f32 0.0, %v315
    %317 = vmatmul.f32.gmra.mxu0 %v237
    %v318 = vpop.f32.mrf.mxu0
    %v319 = vadd.f32 0.0, %v318
    %320 = vdwg.mxu0
    %v321 = vperm.slane %v115, 1
    %vm322 = vcmp.lt.s32.totalorder %v125, 32
    %vm323 = vcmask 523264
    %v325 = vsel %vm323, 0, 0
    %327 = vmatpush.bf16.msra.mxu0 0
    %328 = vmatpush.bf16.msra.mxu0 0
    %329 = vmatpush.bf16.msra.mxu0 0
    %330 = vmatpush.bf16.msra.mxu0 0
    %331 = vmatpush.bf16.msra.mxu0 %v65
    %332 = vmatpush.bf16.msra.mxu0 %v63
    %333 = vmatpush.bf16.msra.mxu0 %v61
    %334 = vmatpush.bf16.msra.mxu0 %v59
    %335 = vmatmul.bf16.gmra.mxu0 %v325
    %v336 = vpop.f32.mrf.mxu0
    %v337 = vadd.f32 0.0, %v336
    %v338 = vpop.f32.mrf.mxu0
    %339 = vdwg.mxu0
    %340 = vmatpush.bf16.msra.mxu0 0
    %341 = vmatpush.bf16.msra.mxu0 0
    %342 = vmatpush.bf16.msra.mxu0 0
    %343 = vmatpush.bf16.msra.mxu0 0
    %344 = vmatpush.bf16.msra.mxu0 %v66
    %345 = vmatpush.bf16.msra.mxu0 %v64
    %346 = vmatpush.bf16.msra.mxu0 %v62
    %347 = vmatpush.bf16.msra.mxu0 %v60
    %348 = vmatmul.bf16.gmra.mxu0 %v325
    %v349 = vpop.f32.mrf.mxu0
    %v350 = vadd.f32 0.0, %v349
    %v351 = vpop.f32.mrf.mxu0
    %352 = vdwg.mxu0
    %v353 = vadd.f32 %v257, %v337
    %v354 = vxor.u32 %v353, 2147483648
    %v355 = vmul.f32 %v354, 1.442695
    %v356 = vpow.pop %v355
    %v357 = vadd.f32 %v356, 1.0
    %v358 = vrcp.pop %v357
    %v359 = vmul.f32 %v357, %v358
    %v360 = vsub.f32 1.0, %v359
    %v361 = vmul.f32 %v358, %v360
    %v362 = vadd.f32 %v358, %v361
    %vm363 = vweird.f32 %v357
    %vm364 = vweird.f32 %v358
    %vm365 = vmor %vm363, %vm364
    %v366 = vsel %vm365, %v358, %v362
    %v367 = vand.u32 2147483647, %v357
    %vm368 = vcmp.eq.f32.partialorder %v367, 8.507059e+37
    %v369 = vand.u32 %v357, 2147483648
    %v370 = vor.u32 1.1754944e-38, %v369
    %v371 = vsel %vm368, %v370, %v366
    %v372 = vmul.f32 1.0, %v371
    %v373 = vadd.f32 %v350, %v321
    %v374 = vmul.f32 %v372, %v373
    %v375 = vadd.f32 %v298, %v374
    %v376 = vtanh.pop %v375
    %v377 = vsub.f32 1.0, %v372
    %379 = vrot.lane.b32.xlu0 %v376, 64
    %v380 = vpop.permute.xlu0 %379
    %v382 = vmul.f32 %v377, %v380
    %v383 = vmul.f32 %v372, 0.0
    %v384 = vadd.f32 %v382, %v383
    %v385 = vpack.c.bf16 %v384, %v384
    %387 = vrot.lane.b32.xlu0 %v385, 64
    %v388 = vpop.permute.xlu0 %387
    %v390 = vsel %vm323, %v388, 0
    %392 = vmatpush.bf16.msra.mxu0 0
    %393 = vmatpush.bf16.msra.mxu0 0
    %394 = vmatpush.bf16.msra.mxu0 0
    %395 = vmatpush.bf16.msra.mxu0 0
    %396 = vmatpush.bf16.msra.mxu0 %v65
    %397 = vmatpush.bf16.msra.mxu0 %v63
    %398 = vmatpush.bf16.msra.mxu0 %v61
    %399 = vmatpush.bf16.msra.mxu0 %v59
    %400 = vmatmul.bf16.gmra.mxu0 %v390
    %v401 = vpop.f32.mrf.mxu0
    %v402 = vadd.f32 0.0, %v401
    %v403 = vpop.f32.mrf.mxu0
    %404 = vdwg.mxu0
    %405 = vmatpush.bf16.msra.mxu0 0
    %406 = vmatpush.bf16.msra.mxu0 0
    %407 = vmatpush.bf16.msra.mxu0 0
    %408 = vmatpush.bf16.msra.mxu0 0
    %409 = vmatpush.bf16.msra.mxu0 %v66
    %410 = vmatpush.bf16.msra.mxu0 %v64
    %411 = vmatpush.bf16.msra.mxu0 %v62
    %412 = vmatpush.bf16.msra.mxu0 %v60
    %413 = vmatmul.bf16.gmra.mxu0 %v390
    %v414 = vpop.f32.mrf.mxu0
    %v415 = vadd.f32 0.0, %v414
    %v416 = vpop.f32.mrf.mxu0
    %417 = vdwg.mxu0
    %v418 = vadd.f32 %v260, %v402
    %v419 = vxor.u32 %v418, 2147483648
    %v420 = vmul.f32 %v419, 1.442695
    %v421 = vpow.pop %v420
    %v422 = vadd.f32 %v421, 1.0
    %v423 = vrcp.pop %v422
    %v424 = vmul.f32 %v422, %v423
    %v425 = vsub.f32 1.0, %v424
    %v426 = vmul.f32 %v423, %v425
    %v427 = vadd.f32 %v423, %v426
    %vm428 = vweird.f32 %v422
    %vm429 = vweird.f32 %v423
    %vm430 = vmor %vm428, %vm429
    %v431 = vsel %vm430, %v423, %v427
    %v432 = vand.u32 2147483647, %v422
    %vm433 = vcmp.eq.f32.partialorder %v432, 8.507059e+37
    %v434 = vand.u32 %v422, 2147483648
    %v435 = vor.u32 1.1754944e-38, %v434
    %v436 = vsel %vm433, %v435, %v431
    %v437 = vmul.f32 1.0, %v436
    %v438 = vadd.f32 %v415, %v321
    %v439 = vmul.f32 %v437, %v438
    %v440 = vadd.f32 %v301, %v439
    %v441 = vtanh.pop %v440
    %v442 = vsub.f32 1.0, %v437
    %444 = vrot.lane.b32.xlu0 %v441, 64
    %v445 = vpop.permute.xlu0 %444
    %v447 = vmul.f32 %v442, %v445
    %v448 = vmul.f32 %v437, %v384
    %v449 = vadd.f32 %v447, %v448
    %v450 = vpack.c.bf16 %v449, %v449
    %452 = vrot.lane.b32.xlu0 %v450, 64
    %v453 = vpop.permute.xlu0 %452
    %v455 = vsel %vm323, %v453, 0
    %457 = vmatpush.bf16.msra.mxu0 0
    %458 = vmatpush.bf16.msra.mxu0 0
    %459 = vmatpush.bf16.msra.mxu0 0
    %460 = vmatpush.bf16.msra.mxu0 0
    %461 = vmatpush.bf16.msra.mxu0 %v65
    %462 = vmatpush.bf16.msra.mxu0 %v63
    %463 = vmatpush.bf16.msra.mxu0 %v61
    %464 = vmatpush.bf16.msra.mxu0 %v59
    %465 = vmatmul.bf16.gmra.mxu0 %v455
    %v466 = vpop.f32.mrf.mxu0
    %v467 = vadd.f32 0.0, %v466
    %v468 = vpop.f32.mrf.mxu0
    %469 = vdwg.mxu0
    %470 = vmatpush.bf16.msra.mxu0 0
    %471 = vmatpush.bf16.msra.mxu0 0
    %472 = vmatpush.bf16.msra.mxu0 0
    %473 = vmatpush.bf16.msra.mxu0 0
    %474 = vmatpush.bf16.msra.mxu0 %v66
    %475 = vmatpush.bf16.msra.mxu0 %v64
    %476 = vmatpush.bf16.msra.mxu0 %v62
    %477 = vmatpush.bf16.msra.mxu0 %v60
    %478 = vmatmul.bf16.gmra.mxu0 %v455
    %v479 = vpop.f32.mrf.mxu0
    %v480 = vadd.f32 0.0, %v479
    %v481 = vpop.f32.mrf.mxu0
    %482 = vdwg.mxu0
    %v483 = vadd.f32 %v263, %v467
    %v484 = vxor.u32 %v483, 2147483648
    %v485 = vmul.f32 %v484, 1.442695
    %v486 = vpow.pop %v485
    %v487 = vadd.f32 %v486, 1.0
    %v488 = vrcp.pop %v487
    %v489 = vmul.f32 %v487, %v488
    %v490 = vsub.f32 1.0, %v489
    %v491 = vmul.f32 %v488, %v490
    %v492 = vadd.f32 %v488, %v491
    %vm493 = vweird.f32 %v487
    %vm494 = vweird.f32 %v488
    %vm495 = vmor %vm493, %vm494
    %v496 = vsel %vm495, %v488, %v492
    %v497 = vand.u32 2147483647, %v487
    %vm498 = vcmp.eq.f32.partialorder %v497, 8.507059e+37
    %v499 = vand.u32 %v487, 2147483648
    %v500 = vor.u32 1.1754944e-38, %v499
    %v501 = vsel %vm498, %v500, %v496
    %v502 = vmul.f32 1.0, %v501
    %v503 = vadd.f32 %v480, %v321
    %v504 = vmul.f32 %v502, %v503
    %v505 = vadd.f32 %v304, %v504
    %v506 = vtanh.pop %v505
    %v507 = vsub.f32 1.0, %v502
    %509 = vrot.lane.b32.xlu0 %v506, 64
    %v510 = vpop.permute.xlu0 %509
    %v512 = vmul.f32 %v507, %v510
    %v513 = vmul.f32 %v502, %v449
    %v514 = vadd.f32 %v512, %v513
    %v515 = vpack.c.bf16 %v514, %v514
    %517 = vrot.lane.b32.xlu0 %v515, 64
    %v518 = vpop.permute.xlu0 %517
    %v520 = vsel %vm323, %v518, 0
    %522 = vmatpush.bf16.msra.mxu0 0
    %523 = vmatpush.bf16.msra.mxu0 0
    %524 = vmatpush.bf16.msra.mxu0 0
    %525 = vmatpush.bf16.msra.mxu0 0
    %526 = vmatpush.bf16.msra.mxu0 %v65
    %527 = vmatpush.bf16.msra.mxu0 %v63
    %528 = vmatpush.bf16.msra.mxu0 %v61
    %529 = vmatpush.bf16.msra.mxu0 %v59
    %530 = vmatmul.bf16.gmra.mxu0 %v520
    %v531 = vpop.f32.mrf.mxu0
    %v532 = vadd.f32 0.0, %v531
    %v533 = vpop.f32.mrf.mxu0
    %534 = vdwg.mxu0
    %535 = vmatpush.bf16.msra.mxu0 0
    %536 = vmatpush.bf16.msra.mxu0 0
    %537 = vmatpush.bf16.msra.mxu0 0
    %538 = vmatpush.bf16.msra.mxu0 0
    %539 = vmatpush.bf16.msra.mxu0 %v66
    %540 = vmatpush.bf16.msra.mxu0 %v64
    %541 = vmatpush.bf16.msra.mxu0 %v62
    %542 = vmatpush.bf16.msra.mxu0 %v60
    %543 = vmatmul.bf16.gmra.mxu0 %v520
    %v544 = vpop.f32.mrf.mxu0
    %v545 = vadd.f32 0.0, %v544
    %v546 = vpop.f32.mrf.mxu0
    %547 = vdwg.mxu0
    %v548 = vadd.f32 %v266, %v532
    %v549 = vxor.u32 %v548, 2147483648
    %v550 = vmul.f32 %v549, 1.442695
    %v551 = vpow.pop %v550
    %v552 = vadd.f32 %v551, 1.0
    %v553 = vrcp.pop %v552
    %v554 = vmul.f32 %v552, %v553
    %v555 = vsub.f32 1.0, %v554
    %v556 = vmul.f32 %v553, %v555
    %v557 = vadd.f32 %v553, %v556
    %vm558 = vweird.f32 %v552
    %vm559 = vweird.f32 %v553
    %vm560 = vmor %vm558, %vm559
    %v561 = vsel %vm560, %v553, %v557
    %v562 = vand.u32 2147483647, %v552
    %vm563 = vcmp.eq.f32.partialorder %v562, 8.507059e+37
    %v564 = vand.u32 %v552, 2147483648
    %v565 = vor.u32 1.1754944e-38, %v564
    %v566 = vsel %vm563, %v565, %v561
    %v567 = vmul.f32 1.0, %v566
    %v568 = vadd.f32 %v545, %v321
    %v569 = vmul.f32 %v567, %v568
    %v570 = vadd.f32 %v307, %v569
    %v571 = vtanh.pop %v570
    %v572 = vsub.f32 1.0, %v567
    %574 = vrot.lane.b32.xlu0 %v571, 64
    %v575 = vpop.permute.xlu0 %574
    %v577 = vmul.f32 %v572, %v575
    %v578 = vmul.f32 %v567, %v514
    %v579 = vadd.f32 %v577, %v578
    %v580 = vpack.c.bf16 %v579, %v579
    %582 = vrot.lane.b32.xlu0 %v580, 64
    %v583 = vpop.permute.xlu0 %582
    %v585 = vsel %vm323, %v583, 0
    %587 = vmatpush.bf16.msra.mxu0 0
    %588 = vmatpush.bf16.msra.mxu0 0
    %589 = vmatpush.bf16.msra.mxu0 0
    %590 = vmatpush.bf16.msra.mxu0 0
    %591 = vmatpush.bf16.msra.mxu0 %v65
    %592 = vmatpush.bf16.msra.mxu0 %v63
    %593 = vmatpush.bf16.msra.mxu0 %v61
    %594 = vmatpush.bf16.msra.mxu0 %v59
    %595 = vmatmul.bf16.gmra.mxu0 %v585
    %v596 = vpop.f32.mrf.mxu0
    %v597 = vadd.f32 0.0, %v596
    %v598 = vpop.f32.mrf.mxu0
    %599 = vdwg.mxu0
    %600 = vmatpush.bf16.msra.mxu0 0
    %601 = vmatpush.bf16.msra.mxu0 0
    %602 = vmatpush.bf16.msra.mxu0 0
    %603 = vmatpush.bf16.msra.mxu0 0
    %604 = vmatpush.bf16.msra.mxu0 %v66
    %605 = vmatpush.bf16.msra.mxu0 %v64
    %606 = vmatpush.bf16.msra.mxu0 %v62
    %607 = vmatpush.bf16.msra.mxu0 %v60
    %608 = vmatmul.bf16.gmra.mxu0 %v585
    %v609 = vpop.f32.mrf.mxu0
    %v610 = vadd.f32 0.0, %v609
    %v611 = vpop.f32.mrf.mxu0
    %612 = vdwg.mxu0
    %v613 = vadd.f32 %v269, %v597
    %v614 = vxor.u32 %v613, 2147483648
    %v615 = vmul.f32 %v614, 1.442695
    %v616 = vpow.pop %v615
    %v617 = vadd.f32 %v616, 1.0
    %v618 = vrcp.pop %v617
    %v619 = vmul.f32 %v617, %v618
    %v620 = vsub.f32 1.0, %v619
    %v621 = vmul.f32 %v618, %v620
    %v622 = vadd.f32 %v618, %v621
    %vm623 = vweird.f32 %v617
    %vm624 = vweird.f32 %v618
    %vm625 = vmor %vm623, %vm624
    %v626 = vsel %vm625, %v618, %v622
    %v627 = vand.u32 2147483647, %v617
    %vm628 = vcmp.eq.f32.partialorder %v627, 8.507059e+37
    %v629 = vand.u32 %v617, 2147483648
    %v630 = vor.u32 1.1754944e-38, %v629
    %v631 = vsel %vm628, %v630, %v626
    %v632 = vmul.f32 1.0, %v631
    %v633 = vadd.f32 %v610, %v321
    %v634 = vmul.f32 %v632, %v633
    %v635 = vadd.f32 %v310, %v634
    %v636 = vtanh.pop %v635
    %v637 = vsub.f32 1.0, %v632
    %639 = vrot.lane.b32.xlu0 %v636, 64
    %v640 = vpop.permute.xlu0 %639
    %v642 = vmul.f32 %v637, %v640
    %v643 = vmul.f32 %v632, %v579
    %v644 = vadd.f32 %v642, %v643
    %646 = vrot.lane.b32.xlu0 %v644, 64
    %v647 = vpop.permute.xlu0 %646
    %650 = vrot.lane.b32.xlu0 %v579, 64
    %v651 = vpop.permute.xlu0 %650
    %v653 = vsel %vm322, %v647, %v651
    %v654 = vpack.c.bf16 %v653, %v653
    %v656 = vsel %vm323, %v654, 0
    %658 = vmatpush.bf16.msra.mxu0 0
    %659 = vmatpush.bf16.msra.mxu0 0
    %660 = vmatpush.bf16.msra.mxu0 0
    %661 = vmatpush.bf16.msra.mxu0 0
    %662 = vmatpush.bf16.msra.mxu0 %v65
    %663 = vmatpush.bf16.msra.mxu0 %v63
    %664 = vmatpush.bf16.msra.mxu0 %v61
    %665 = vmatpush.bf16.msra.mxu0 %v59
    %666 = vmatmul.bf16.gmra.mxu0 %v656
    %v667 = vpop.f32.mrf.mxu0
    %v668 = vadd.f32 0.0, %v667
    %v669 = vpop.f32.mrf.mxu0
    %670 = vdwg.mxu0
    %671 = vmatpush.bf16.msra.mxu0 0
    %672 = vmatpush.bf16.msra.mxu0 0
    %673 = vmatpush.bf16.msra.mxu0 0
    %674 = vmatpush.bf16.msra.mxu0 0
    %675 = vmatpush.bf16.msra.mxu0 %v66
    %676 = vmatpush.bf16.msra.mxu0 %v64
    %677 = vmatpush.bf16.msra.mxu0 %v62
    %678 = vmatpush.bf16.msra.mxu0 %v60
    %679 = vmatmul.bf16.gmra.mxu0 %v656
    %v680 = vpop.f32.mrf.mxu0
    %v681 = vadd.f32 0.0, %v680
    %v682 = vpop.f32.mrf.mxu0
    %683 = vdwg.mxu0
    %v684 = vadd.f32 %v272, %v668
    %v685 = vxor.u32 %v684, 2147483648
    %v686 = vmul.f32 %v685, 1.442695
    %v687 = vpow.pop %v686
    %v688 = vadd.f32 %v687, 1.0
    %v689 = vrcp.pop %v688
    %v690 = vmul.f32 %v688, %v689
    %v691 = vsub.f32 1.0, %v690
    %v692 = vmul.f32 %v689, %v691
    %v693 = vadd.f32 %v689, %v692
    %vm694 = vweird.f32 %v688
    %vm695 = vweird.f32 %v689
    %vm696 = vmor %vm694, %vm695
    %v697 = vsel %vm696, %v689, %v693
    %v698 = vand.u32 2147483647, %v688
    %vm699 = vcmp.eq.f32.partialorder %v698, 8.507059e+37
    %v700 = vand.u32 %v688, 2147483648
    %v701 = vor.u32 1.1754944e-38, %v700
    %v702 = vsel %vm699, %v701, %v697
    %v703 = vmul.f32 1.0, %v702
    %v704 = vadd.f32 %v681, %v321
    %v705 = vmul.f32 %v703, %v704
    %v706 = vadd.f32 %v313, %v705
    %v707 = vtanh.pop %v706
    %v708 = vsub.f32 1.0, %v703
    %710 = vrot.lane.b32.xlu0 %v707, 64
    %v711 = vpop.permute.xlu0 %710
    %v713 = vmul.f32 %v708, %v711
    %715 = vrot.lane.b32.xlu0 %v653, 64
    %v716 = vpop.permute.xlu0 %715
    %v718 = vmul.f32 %v703, %v716
    %v719 = vadd.f32 %v713, %v718
    %721 = vrot.lane.b32.xlu0 %v719, 64
    %v722 = vpop.permute.xlu0 %721
    %v724 = vsel %vm322, %v722, %v651
    %v725 = vpack.c.bf16 %v724, %v724
    %v727 = vsel %vm323, %v725, 0
    %729 = vmatpush.bf16.msra.mxu0 0
    %730 = vmatpush.bf16.msra.mxu0 0
    %731 = vmatpush.bf16.msra.mxu0 0
    %732 = vmatpush.bf16.msra.mxu0 0
    %733 = vmatpush.bf16.msra.mxu0 %v65
    %734 = vmatpush.bf16.msra.mxu0 %v63
    %735 = vmatpush.bf16.msra.mxu0 %v61
    %736 = vmatpush.bf16.msra.mxu0 %v59
    %737 = vmatmul.bf16.gmra.mxu0 %v727
    %v738 = vpop.f32.mrf.mxu0
    %v739 = vadd.f32 0.0, %v738
    %v740 = vpop.f32.mrf.mxu0
    %741 = vdwg.mxu0
    %742 = vmatpush.bf16.msra.mxu0 0
    %743 = vmatpush.bf16.msra.mxu0 0
    %744 = vmatpush.bf16.msra.mxu0 0
    %745 = vmatpush.bf16.msra.mxu0 0
    %746 = vmatpush.bf16.msra.mxu0 %v66
    %747 = vmatpush.bf16.msra.mxu0 %v64
    %748 = vmatpush.bf16.msra.mxu0 %v62
    %749 = vmatpush.bf16.msra.mxu0 %v60
    %750 = vmatmul.bf16.gmra.mxu0 %v727
    %v751 = vpop.f32.mrf.mxu0
    %v752 = vadd.f32 0.0, %v751
    %v753 = vpop.f32.mrf.mxu0
    %754 = vdwg.mxu0
    %v755 = vadd.f32 %v275, %v739
    %v756 = vxor.u32 %v755, 2147483648
    %v757 = vmul.f32 %v756, 1.442695
    %v758 = vpow.pop %v757
    %v759 = vadd.f32 %v758, 1.0
    %v760 = vrcp.pop %v759
    %v761 = vmul.f32 %v759, %v760
    %v762 = vsub.f32 1.0, %v761
    %v763 = vmul.f32 %v760, %v762
    %v764 = vadd.f32 %v760, %v763
    %vm765 = vweird.f32 %v759
    %vm766 = vweird.f32 %v760
    %vm767 = vmor %vm765, %vm766
    %v768 = vsel %vm767, %v760, %v764
    %v769 = vand.u32 2147483647, %v759
    %vm770 = vcmp.eq.f32.partialorder %v769, 8.507059e+37
    %v771 = vand.u32 %v759, 2147483648
    %v772 = vor.u32 1.1754944e-38, %v771
    %v773 = vsel %vm770, %v772, %v768
    %v774 = vmul.f32 1.0, %v773
    %v775 = vadd.f32 %v752, %v321
    %v776 = vmul.f32 %v774, %v775
    %v777 = vadd.f32 %v316, %v776
    %v778 = vtanh.pop %v777
    %v779 = vsub.f32 1.0, %v774
    %781 = vrot.lane.b32.xlu0 %v778, 64
    %v782 = vpop.permute.xlu0 %781
    %v784 = vmul.f32 %v779, %v782
    %786 = vrot.lane.b32.xlu0 %v724, 64
    %v787 = vpop.permute.xlu0 %786
    %v789 = vmul.f32 %v774, %v787
    %v790 = vadd.f32 %v784, %v789
    %792 = vrot.lane.b32.xlu0 %v790, 64
    %v793 = vpop.permute.xlu0 %792
    %v795 = vsel %vm322, %v793, %v651
    %v796 = vpack.c.bf16 %v795, %v795
    %v798 = vsel %vm323, %v796, 0
    %800 = vmatpush.bf16.msra.mxu0 0
    %801 = vmatpush.bf16.msra.mxu0 0
    %802 = vmatpush.bf16.msra.mxu0 0
    %803 = vmatpush.bf16.msra.mxu0 0
    %804 = vmatpush.bf16.msra.mxu0 %v65
    %805 = vmatpush.bf16.msra.mxu0 %v63
    %806 = vmatpush.bf16.msra.mxu0 %v61
    %807 = vmatpush.bf16.msra.mxu0 %v59
    %808 = vmatmul.bf16.gmra.mxu0 %v798
    %v809 = vpop.f32.mrf.mxu0
    %v810 = vadd.f32 0.0, %v809
    %v811 = vpop.f32.mrf.mxu0
    %812 = vdwg.mxu0
    %813 = vmatpush.bf16.msra.mxu0 0
    %814 = vmatpush.bf16.msra.mxu0 0
    %815 = vmatpush.bf16.msra.mxu0 0
    %816 = vmatpush.bf16.msra.mxu0 0
    %817 = vmatpush.bf16.msra.mxu0 %v66
    %818 = vmatpush.bf16.msra.mxu0 %v64
    %819 = vmatpush.bf16.msra.mxu0 %v62
    %820 = vmatpush.bf16.msra.mxu0 %v60
    %821 = vmatmul.bf16.gmra.mxu0 %v798
    %v822 = vpop.f32.mrf.mxu0
    %v823 = vadd.f32 0.0, %v822
    %v824 = vpop.f32.mrf.mxu0
    %825 = vdwg.mxu0
    %v826 = vadd.f32 %v278, %v810
    %v827 = vxor.u32 %v826, 2147483648
    %v828 = vmul.f32 %v827, 1.442695
    %v829 = vpow.pop %v828
    %v830 = vadd.f32 %v829, 1.0
    %v831 = vrcp.pop %v830
    %v832 = vmul.f32 %v830, %v831
    %v833 = vsub.f32 1.0, %v832
    %v834 = vmul.f32 %v831, %v833
    %v835 = vadd.f32 %v831, %v834
    %vm836 = vweird.f32 %v830
    %vm837 = vweird.f32 %v831
    %vm838 = vmor %vm836, %vm837
    %v839 = vsel %vm838, %v831, %v835
    %v840 = vand.u32 2147483647, %v830
    %vm841 = vcmp.eq.f32.partialorder %v840, 8.507059e+37
    %v842 = vand.u32 %v830, 2147483648
    %v843 = vor.u32 1.1754944e-38, %v842
    %v844 = vsel %vm841, %v843, %v839
    %v845 = vmul.f32 1.0, %v844
    %v846 = vadd.f32 %v823, %v321
    %v847 = vmul.f32 %v845, %v846
    %v848 = vadd.f32 %v319, %v847
    %v849 = vtanh.pop %v848
    %v850 = vsub.f32 1.0, %v845
    %852 = vrot.lane.b32.xlu0 %v849, 64
    %v853 = vpop.permute.xlu0 %852
    %v855 = vmul.f32 %v850, %v853
    %857 = vrot.lane.b32.xlu0 %v795, 64
    %v858 = vpop.permute.xlu0 %857
    %v860 = vmul.f32 %v845, %v858
    %v861 = vadd.f32 %v855, %v860
    %863 = vrot.lane.b32.xlu0 %v861, 64
    %v864 = vpop.permute.xlu0 %863
    %v866 = vsel %vm322, %v864, %v651
    %v867 = vld [vmem:[%s1] sm:$0xff]
    %v868 = vld [vmem:[%s1 + $0x8] sm:$0xff]
    %v869 = vpack.c.bf16 %v866, %v866
    %v870 = vperm.slane %v115, 0
    %v872 = vsel %vm323, %v869, 0
    %874 = vmatpush.bf16.msra.mxu0 0
    %875 = vmatpush.bf16.msra.mxu0 0
    %876 = vmatpush.bf16.msra.mxu0 0
    %877 = vmatpush.bf16.msra.mxu0 0
    %878 = vmatpush.bf16.msra.mxu0 %v78
    %879 = vmatpush.bf16.msra.mxu0 %v77
    %880 = vmatpush.bf16.msra.mxu0 %v76
    %881 = vmatpush.bf16.msra.mxu0 %v75
    %882 = vmatmul.bf16.gmra.mxu0 %v872
    %v883 = vpop.f32.mrf.mxu0
    %v884 = vadd.f32 %v870, %v883
    %v885 = vpop.f32.mrf.mxu0
    %886 = vdwg.mxu0
    %v887 = vpack.c.bf16 %v868, %v867
    %vm888 = vcmask 261120
    %v890 = vsel %vm888, %v887, 0
    %892 = vmatpush.bf16.msra.mxu0 0
    %893 = vmatpush.bf16.msra.mxu0 0
    %894 = vmatpush.bf16.msra.mxu0 0
    %895 = vmatpush.bf16.msra.mxu0 0
    %896 = vmatpush.bf16.msra.mxu0 0
    %897 = vmatpush.bf16.msra.mxu0 0
    %898 = vmatpush.bf16.msra.mxu0 %v84
    %899 = vmatpush.bf16.msra.mxu0 %v83
    %900 = vmatmul.bf16.gmra.mxu0 %v890
    %v901 = vpop.f32.mrf.mxu0
    %v902 = vadd.f32 0.0, %v901
    %v903 = vpop.f32.mrf.mxu0
    %v904 = vadd.f32 0.0, %v903
    %905 = vdwg.mxu0
    %v906 = vperm.slane %v884, 0
    %v907 = vadd.f32 %v902, %v906
    %v908 = vtanh.pop %v907
    %v909 = vperm.slane %v115, 4
    %v910 = vmul.f32 %v908, %v909
    %v911 = vsel %vm888, %v910, 0.0
    %912 = vadd.xlane.f32.xlu0 %v911
    %v913 = vpop.xlane.xlu0 %912
    %915 = vrot.lane.b32.xlu0 %v910, 96
    %v916 = vpop.permute.xlu0 %915
    %v918 = vsel %vm888, %v916, 0.0
    %919 = vadd.xlane.f32.xlu0 %v918
    %v920 = vpop.xlane.xlu0 %919
    %v921 = vrot.slane %v913, 4
    %v922 = vmax.f32 %v913, %v921
    %v923 = vrot.slane %v922, 2
    %v924 = vmax.f32 %v922, %v923
    %v925 = vrot.slane %v924, 1
    %v926 = vmax.f32 %v924, %v925
    %v927 = vsub.f32 %v913, %v926
    %v928 = vmul.f32 %v927, 1.442695
    %v929 = vpow.pop %v928
    %v930 = vrot.slane %v929, 4
    %v931 = vadd.f32 %v929, %v930
    %v932 = vrot.slane %v931, 2
    %v933 = vadd.f32 %v931, %v932
    %v934 = vrot.slane %v933, 1
    %v935 = vadd.f32 %v933, %v934
    %v936 = vrcp.pop %v935
    %v937 = vmul.f32 %v929, %v936
    %v938 = vmul.f32 %v937, %v867
    %v939 = vsel %vm888, %v938, 0.0
    %v940 = vrot.slane %v939, 4
    %v941 = vadd.f32 %v939, %v940
    %v942 = vrot.slane %v941, 2
    %v943 = vadd.f32 %v941, %v942
    %v944 = vrot.slane %v943, 1
    %v945 = vadd.f32 %v943, %v944
    %v946 = vrot.slane %v920, 4
    %v947 = vmax.f32 %v920, %v946
    %v948 = vrot.slane %v947, 2
    %v949 = vmax.f32 %v947, %v948
    %v950 = vrot.slane %v949, 1
    %v951 = vmax.f32 %v949, %v950
    %v952 = vsub.f32 %v920, %v951
    %v953 = vmul.f32 %v952, 1.442695
    %v954 = vpow.pop %v953
    %v955 = vrot.slane %v954, 4
    %v956 = vadd.f32 %v954, %v955
    %v957 = vrot.slane %v956, 2
    %v958 = vadd.f32 %v956, %v957
    %v959 = vrot.slane %v958, 1
    %v960 = vadd.f32 %v958, %v959
    %v961 = vrcp.pop %v960
    %v962 = vmul.f32 %v954, %v961
    %v963 = vmul.f32 %v962, %v867
    %v964 = vsel %vm888, %v963, 0.0
    %v965 = vrot.slane %v964, 4
    %v966 = vadd.f32 %v964, %v965
    %v967 = vrot.slane %v966, 2
    %v968 = vadd.f32 %v966, %v967
    %v969 = vrot.slane %v968, 1
    %v970 = vadd.f32 %v968, %v969
    %v971 = vperm.slane %v884, 1
    %v972 = vadd.f32 %v904, %v971
    %v973 = vtanh.pop %v972
    %v974 = vmul.f32 %v973, %v909
    %v975 = vsel %vm888, %v974, 0.0
    %976 = vadd.xlane.f32.xlu0 %v975
    %v977 = vpop.xlane.xlu0 %976
    %979 = vrot.lane.b32.xlu0 %v974, 96
    %v980 = vpop.permute.xlu0 %979
    %v982 = vsel %vm888, %v980, 0.0
    %983 = vadd.xlane.f32.xlu0 %v982
    %v984 = vpop.xlane.xlu0 %983
    %v985 = vrot.slane %v977, 4
    %v986 = vmax.f32 %v977, %v985
    %v987 = vrot.slane %v986, 2
    %v988 = vmax.f32 %v986, %v987
    %v989 = vrot.slane %v988, 1
    %v990 = vmax.f32 %v988, %v989
    %v991 = vsub.f32 %v977, %v990
    %v992 = vmul.f32 %v991, 1.442695
    %v993 = vpow.pop %v992
    %v994 = vrot.slane %v993, 4
    %v995 = vadd.f32 %v993, %v994
    %v996 = vrot.slane %v995, 2
    %v997 = vadd.f32 %v995, %v996
    %v998 = vrot.slane %v997, 1
    %v999 = vadd.f32 %v997, %v998
    %v1000 = vrcp.pop %v999
    %v1001 = vmul.f32 %v993, %v1000
    %v1002 = vmul.f32 %v1001, %v868
    %v1003 = vsel %vm888, %v1002, 0.0
    %v1004 = vrot.slane %v1003, 4
    %v1005 = vadd.f32 %v1003, %v1004
    %v1006 = vrot.slane %v1005, 2
    %v1007 = vadd.f32 %v1005, %v1006
    %v1008 = vrot.slane %v1007, 1
    %v1009 = vadd.f32 %v1007, %v1008
    %v1010 = vrot.slane %v984, 4
    %v1011 = vmax.f32 %v984, %v1010
    %v1012 = vrot.slane %v1011, 2
    %v1013 = vmax.f32 %v1011, %v1012
    %v1014 = vrot.slane %v1013, 1
    %v1015 = vmax.f32 %v1013, %v1014
    %v1016 = vsub.f32 %v984, %v1015
    %v1017 = vmul.f32 %v1016, 1.442695
    %v1018 = vpow.pop %v1017
    %v1019 = vrot.slane %v1018, 4
    %v1020 = vadd.f32 %v1018, %v1019
    %v1021 = vrot.slane %v1020, 2
    %v1022 = vadd.f32 %v1020, %v1021
    %v1023 = vrot.slane %v1022, 1
    %v1024 = vadd.f32 %v1022, %v1023
    %v1025 = vrcp.pop %v1024
    %v1026 = vmul.f32 %v1018, %v1025
    %v1027 = vmul.f32 %v1026, %v868
    %v1028 = vsel %vm888, %v1027, 0.0
    %v1029 = vrot.slane %v1028, 4
    %v1030 = vadd.f32 %v1028, %v1029
    %v1031 = vrot.slane %v1030, 2
    %v1032 = vadd.f32 %v1030, %v1031
    %v1033 = vrot.slane %v1032, 1
    %v1034 = vadd.f32 %v1032, %v1033
    %vm1035 = vcmask 1040384
    %v1036 = vsel %vm1035, %v945, %v1009
    %v1037 = vsel %vm1035, %v970, %v1034
    %1039 = vrot.lane.b32.xlu0 %v866, 96
    %v1040 = vpop.permute.xlu0 %1039
    %v1042 = vadd.f32 %v866, %v1040
    %v1043 = vpack.c.bf16 %v1036, %v1036
    %v1045 = vsel %vm888, %v1043, 0
    %1047 = vmatpush.bf16.msra.mxu0 0
    %1048 = vmatpush.bf16.msra.mxu0 0
    %1049 = vmatpush.bf16.msra.mxu0 0
    %1050 = vmatpush.bf16.msra.mxu0 0
    %1051 = vmatpush.bf16.msra.mxu0 0
    %1052 = vmatpush.bf16.msra.mxu0 0
    %1053 = vmatpush.bf16.msra.mxu0 %v90
    %1054 = vmatpush.bf16.msra.mxu0 %v89
    %1055 = vmatmul.bf16.gmra.mxu0 %v1045
    %v1056 = vpop.f32.mrf.mxu0
    %v1057 = vadd.f32 0.0, %v1056
    %v1058 = vpop.f32.mrf.mxu0
    %1059 = vdwg.mxu0
    %v1060 = vadd.f32 %v1042, %v1057
    %v1061 = vpack.c.bf16 %v1037, %v1037
    %v1063 = vsel %vm888, %v1061, 0
    %1065 = vmatpush.bf16.msra.mxu0 0
    %1066 = vmatpush.bf16.msra.mxu0 0
    %1067 = vmatpush.bf16.msra.mxu0 0
    %1068 = vmatpush.bf16.msra.mxu0 0
    %1069 = vmatpush.bf16.msra.mxu0 0
    %1070 = vmatpush.bf16.msra.mxu0 0
    %1071 = vmatpush.bf16.msra.mxu0 %v96
    %1072 = vmatpush.bf16.msra.mxu0 %v95
    %1073 = vmatmul.bf16.gmra.mxu0 %v1063
    %v1074 = vpop.f32.mrf.mxu0
    %v1075 = vadd.f32 0.0, %v1074
    %v1076 = vpop.f32.mrf.mxu0
    %1077 = vdwg.mxu0
    %v1078 = vadd.f32 %v1060, %v1075
    %v1079 = vpack.c.bf16 %v1078, %v1078
    %v1080 = vperm.slane %v115, 2
    %v1082 = vsel %vm888, %v1079, 0
    %1084 = vmatpush.bf16.msra.mxu0 0
    %1085 = vmatpush.bf16.msra.mxu0 0
    %1086 = vmatpush.bf16.msra.mxu0 0
    %1087 = vmatpush.bf16.msra.mxu0 0
    %1088 = vmatpush.bf16.msra.mxu0 0
    %1089 = vmatpush.bf16.msra.mxu0 0
    %1090 = vmatpush.bf16.msra.mxu0 %v102
    %1091 = vmatpush.bf16.msra.mxu0 %v101
    %1092 = vmatmul.bf16.gmra.mxu0 %v1082
    %v1093 = vpop.f32.mrf.mxu0
    %v1094 = vadd.f32 %v1080, %v1093
    %v1095 = vpop.f32.mrf.mxu0
    %1096 = vdwg.mxu0
    %v1097 = vmax.f32 %v1094, 0.0
    %v1098 = vpack.c.bf16 %v1097, %v1097
    %v1099 = vperm.slane %v115, 3
    %v1101 = vsel %vm323, %v1098, 0
    %1103 = vmatpush.bf16.msra.mxu0 0
    %1104 = vmatpush.bf16.msra.mxu0 0
    %1105 = vmatpush.bf16.msra.mxu0 0
    %1106 = vmatpush.bf16.msra.mxu0 0
    %1107 = vmatpush.bf16.msra.mxu0 %v114
    %1108 = vmatpush.bf16.msra.mxu0 %v113
    %1109 = vmatpush.bf16.msra.mxu0 %v112
    %1110 = vmatpush.bf16.msra.mxu0 %v111
    %1111 = vmatmul.bf16.gmra.mxu0 %v1101
    %v1112 = vpop.f32.mrf.mxu0
    %v1113 = vadd.f32 %v1099, %v1112
    %v1114 = vpop.f32.mrf.mxu0
    %1115 = vdwg.mxu0
    %vm1116 = vcmask 123904
    %1117 = vst.msk [vmem:[#allocation2] sm:$0x3] %vm1116, %v1113
    // Predicated region
    $region18: #{stacked_attention_model_forward.1} parent=1 // pred_check
      _
    $region19: #{stacked_attention_model_forward.1} parent=1 // pred_check_branch
      %1119 = sbr.rel (0) target = $region21
    $region20: #{stacked_attention_model_forward.1} parent=1 // pred_region
      %1121 = vsyncadd [#allocation3], 0
      %s1123 = sshll.u32 [#allocation2], 4
      %s1124 = int_to_ptr.vmem [resolvable:$true] %s1123
      %s1125 = sshll.u32 %s4, 4
      %s1126 = int_to_ptr.hbm [resolvable:$true] %s1125
      %1128 = dma.vmem_to_hbm [thread:$0]  %s1124, 32, %s1126, [#allocation3]
    $region21: #{stacked_attention_model_forward.1} parent=1 // pred_fallthru
      _
    // Predicated region
    $region22: #{stacked_attention_model_forward.1} parent=1 // pred_check
      _
    $region23: #{stacked_attention_model_forward.1} parent=1 // pred_check_branch
      %1130 = sbr.rel (0) target = $region25
    $region24: #{stacked_attention_model_forward.1} parent=1 // pred_region
      %1132 = dma.done [#allocation3], 32
    $region25: #{stacked_attention_model_forward.1} parent=1 // pred_fallthru
      _
    %1133 = vsyncpa [#allocation3], 1

</llo_original>
